<compile_context>
chip_gen: v6e
topology: v6e:2x2x1
jax: 0.10.0
libtpu: 0.0.40
codegen_flags: <defaults>
</compile_context>

<pallas_src>
import jax
import jax.numpy as jnp
from jax.experimental import pallas as pl
from jax.experimental.pallas import tpu as pltpu

# ----------------------------- small CLIP config -----------------------------
IMAGE_SIZE = 16
PATCH_SIZE = 8
CHANNELS = 3
HIDDEN = 32
HEADS = 4
HEAD_DIM = HIDDEN // HEADS
INTERMEDIATE = 64
NUM_LAYERS = 3
SELECT_LAYER = -2          # args.mm_vision_select_layer
SELECT_FEATURE = "patch"   # args.mm_vision_select_feature
NUM_PATCHES = (IMAGE_SIZE // PATCH_SIZE) ** 2
SEQ = NUM_PATCHES + 1      # CLS + patches
CPP = CHANNELS * PATCH_SIZE * PATCH_SIZE
LN_EPS = 1e-5

# hidden_states[0] = post pre_layrnorm embeddings, hidden_states[i] = output of
# encoder layer i; layers past the selected hidden state are never consumed.
_SELECT_IDX = SELECT_LAYER if SELECT_LAYER >= 0 else NUM_LAYERS + 1 + SELECT_LAYER
NUM_USED_LAYERS = _SELECT_IDX
assert 1 <= NUM_USED_LAYERS <= NUM_LAYERS


# ------------------------------ fused Pallas kernel ---------------------------
def _clip_tower_kernel(
    patches_ref,            # (SEQ, CPP)  bf16   zero row where CLS sits
    patch_w_ref,            # (CPP, D)    bf16   conv-as-matmul weight (no bias)
    base_ref,               # (SEQ, D)    f32    class_embedding + pos_emb
    pre_g_ref, pre_b_ref,   # (1, D)      f32    pre_layrnorm
    ln1_g_ref, ln1_b_ref,   # (1, D)      f32    (per-layer block)
    q_w_ref, q_b_ref,       # (D, D) bf16 / (1, D) f32   softmax scale folded in
    k_w_ref, k_b_ref,
    v_w_ref, v_b_ref,
    o_w_ref, o_b_ref,
    ln2_g_ref, ln2_b_ref,   # (1, D)      f32
    fc1_w_ref, fc1_b_ref,   # (D, I) bf16 / (1, I) f32
    fc2_w_ref, fc2_b_ref,   # (I, D) bf16 / (1, D) f32
    out_ref,                # (SEQ, D)    f32    resident hidden state for this image
):
    f32 = jnp.float32
    bf16 = jnp.bfloat16
    layer = pl.program_id(1)

    def layer_norm(x, g_ref, b_ref):
        mu = jnp.mean(x, axis=-1, keepdims=True)
        var = jnp.mean(jnp.square(x - mu), axis=-1, keepdims=True)
        return (x - mu) * jax.lax.rsqrt(var + LN_EPS) * g_ref[...].astype(f32) \
            + b_ref[...].astype(f32)

    def matmul_bias(x, w_ref, b_ref):
        # bf16 operands straight to the MXU, f32 accumulate.
        return jnp.dot(x.astype(bf16), w_ref[...],
                       preferred_element_type=f32) + b_ref[...].astype(f32)

    # ---- layer 0: CLIPVisionEmbeddings (conv-as-matmul + CLS/pos) + pre-LN ----
    @pl.when(layer == 0)
    def _():
        emb = jnp.dot(patches_ref[...], patch_w_ref[...],
                      preferred_element_type=f32) + base_ref[...].astype(f32)
        out_ref[...] = layer_norm(emb, pre_g_ref, pre_b_ref)

    h = out_ref[...]                                        # (SEQ, D) f32

    # ----------------- self-attention (pre-LN residual) ------------------
    x = layer_norm(h, ln1_g_ref, ln1_b_ref)
    q = matmul_bias(x, q_w_ref, q_b_ref)                    # scale already folded in
    k = matmul_bias(x, k_w_ref, k_b_ref)
    v = matmul_bias(x, v_w_ref, v_b_ref)

    head_outs = []
    for hd in range(HEADS):                                 # HEADS=4: full unroll ok
        sl = slice(hd * HEAD_DIM, (hd + 1) * HEAD_DIM)
        q_h = q[:, sl]
        k_h = k[:, sl]
        v_h = v[:, sl]
        # scores without materializing k.T: contract dim 1 of both operands.
        s = jax.lax.dot_general(q_h, k_h, (((1,), (1,)), ((), ())),
                                preferred_element_type=f32)        # (SEQ, SEQ)
        s = s - jnp.max(s, axis=-1, keepdims=True)
        p = jnp.exp(s)
        p = p * pl.reciprocal(jnp.sum(p, axis=-1, keepdims=True), approx=True)
        head_outs.append(jnp.dot(p, v_h, preferred_element_type=f32))
    attn = jnp.concatenate(head_outs, axis=-1)               # (SEQ, D)
    attn = matmul_bias(attn, o_w_ref, o_b_ref)
    h = h + attn

    # ----------------- MLP (pre-LN residual, quick-gelu) -----------------
    x = layer_norm(h, ln2_g_ref, ln2_b_ref)
    x = matmul_bias(x, fc1_w_ref, fc1_b_ref)
    x = x * jax.nn.sigmoid(1.702 * x)                        # quick_gelu
    x = matmul_bias(x, fc2_w_ref, fc2_b_ref)
    out_ref[...] = h + x


# ------------------------------ parameter init --------------------------------
def init_params(key):
    def nrm(k, shape, scale=0.02):
        return (scale * jax.random.normal(k, shape)).astype(jnp.float32)

    keys = iter(jax.random.split(key, 16 + 16 * NUM_LAYERS))
    p = {}
    p["patch_w"] = nrm(next(keys), (CPP, HIDDEN))
    p["class_embedding"] = nrm(next(keys), (HIDDEN,))
    p["pos_emb"] = nrm(next(keys), (SEQ, HIDDEN))
    p["pre_ln_g"] = jnp.ones((HIDDEN,), jnp.float32)
    p["pre_ln_b"] = jnp.zeros((HIDDEN,), jnp.float32)
    p["layers"] = []
    for _ in range(NUM_LAYERS):
        lp = {
            "ln1_g": jnp.ones((HIDDEN,), jnp.float32),
            "ln1_b": jnp.zeros((HIDDEN,), jnp.float32),
            "q_w": nrm(next(keys), (HIDDEN, HIDDEN)), "q_b": nrm(next(keys), (HIDDEN,)),
            "k_w": nrm(next(keys), (HIDDEN, HIDDEN)), "k_b": nrm(next(keys), (HIDDEN,)),
            "v_w": nrm(next(keys), (HIDDEN, HIDDEN)), "v_b": nrm(next(keys), (HIDDEN,)),
            "o_w": nrm(next(keys), (HIDDEN, HIDDEN)), "o_b": nrm(next(keys), (HIDDEN,)),
            "ln2_g": jnp.ones((HIDDEN,), jnp.float32),
            "ln2_b": jnp.zeros((HIDDEN,), jnp.float32),
            "fc1_w": nrm(next(keys), (HIDDEN, INTERMEDIATE)),
            "fc1_b": nrm(next(keys), (INTERMEDIATE,)),
            "fc2_w": nrm(next(keys), (INTERMEDIATE, HIDDEN)),
            "fc2_b": nrm(next(keys), (HIDDEN,)),
        }
        p["layers"].append(lp)
    return p


# ------------------------------ model forward ----------------------------------
def _forward_batched(images, params):
    """images: (B, C, H, W) NCHW. Returns hidden_states[SELECT_LAYER] features."""
    # TODO(synk): CLIPImageProcessor_GIT (bicubic resize / normalization) is
    # host-side preprocessing and is not reproduced here.
    B, C, H, W = images.shape
    P, D, I, L = PATCH_SIZE, HIDDEN, INTERMEDIATE, NUM_USED_LAYERS
    f32, bf16 = jnp.float32, jnp.bfloat16
    x = images.astype(f32)

    # ---- patch extraction (one-time layout plumbing for the conv-as-matmul) ----
    patches = x.reshape(B, C, H // P, P, W // P, P)
    patches = patches.transpose(0, 2, 4, 1, 3, 5).reshape(B, NUM_PATCHES, CPP)
    # prepend one all-zero row per image where the CLS token sits so the
    # in-kernel patch matmul yields rows directly in per-image token order.
    patches_full = jnp.concatenate(
        [jnp.zeros((B, 1, CPP), f32), patches], axis=1).astype(bf16)     # (B,SEQ,CPP)

    # ---- CLS + positional embedding baseline (shared by all images) ----
    base = (jnp.zeros((SEQ, D), f32).at[0].set(params["class_embedding"])
            + params["pos_emb"])                                         # (SEQ, D)

    # ---- stack per-layer params (only the layers feature_select needs);
    #      fold the 1/sqrt(head_dim) softmax scale into q_w / q_b; weights bf16 ----
    lps = params["layers"][:L]
    scale = HEAD_DIM ** -0.5
    stk_w = lambda name: jnp.stack([lp[name] for lp in lps], 0).astype(bf16)
    stk_v = lambda name, n: jnp.stack([lp[name] for lp in lps], 0).reshape(L, 1, n)
    q_w = jnp.stack([lp["q_w"] * scale for lp in lps], 0).astype(bf16)
    q_b = jnp.stack([lp["q_b"] * scale for lp in lps], 0).reshape(L, 1, D)
    kernel_inputs = (
        patches_full,
        params["patch_w"].astype(bf16),
        base,
        params["pre_ln_g"].reshape(1, D), params["pre_ln_b"].reshape(1, D),
        stk_v("ln1_g", D), stk_v("ln1_b", D),
        q_w, q_b,
        stk_w("k_w"), stk_v("k_b", D),
        stk_w("v_w"), stk_v("v_b", D),
        stk_w("o_w"), stk_v("o_b", D),
        stk_v("ln2_g", D), stk_v("ln2_b", D),
        stk_w("fc1_w"), stk_v("fc1_b", I),
        stk_w("fc2_w"), stk_v("fc2_b", D),
    )

    # ---- BlockSpecs: batch axis parallel (megacore/2-TC), layer axis streams
    #      weights; per-image hidden state stays resident in the output block ----
    const2 = lambda b, l: (0, 0)
    batch3 = lambda b, l: (b, 0, 0)
    layer3 = lambda b, l: (l, 0, 0)
    sq = pl.Squeezed()

    in_specs = [
        pl.BlockSpec((sq, SEQ, CPP), batch3),     # patches
        pl.BlockSpec((CPP, D), const2),           # patch_w
        pl.BlockSpec((SEQ, D), const2),           # base
        pl.BlockSpec((1, D), const2),             # pre_ln_g
        pl.BlockSpec((1, D), const2),             # pre_ln_b
        pl.BlockSpec((sq, 1, D), layer3),         # ln1_g
        pl.BlockSpec((sq, 1, D), layer3),         # ln1_b
        pl.BlockSpec((sq, D, D), layer3),         # q_w
        pl.BlockSpec((sq, 1, D), layer3),         # q_b
        pl.BlockSpec((sq, D, D), layer3),         # k_w
        pl.BlockSpec((sq, 1, D), layer3),         # k_b
        pl.BlockSpec((sq, D, D), layer3),         # v_w
        pl.BlockSpec((sq, 1, D), layer3),         # v_b
        pl.BlockSpec((sq, D, D), layer3),         # o_w
        pl.BlockSpec((sq, 1, D), layer3),         # o_b
        pl.BlockSpec((sq, 1, D), layer3),         # ln2_g
        pl.BlockSpec((sq, 1, D), layer3),         # ln2_b
        pl.BlockSpec((sq, D, I), layer3),         # fc1_w
        pl.BlockSpec((sq, 1, I), layer3),         # fc1_b
        pl.BlockSpec((sq, I, D), layer3),         # fc2_w
        pl.BlockSpec((sq, 1, D), layer3),         # fc2_b
    ]
    out_spec = pl.BlockSpec((sq, SEQ, D), batch3)

    # advisory cost estimate
    layer_flops = 2 * SEQ * D * D * 4 + 2 * SEQ * SEQ * D * 2 + 2 * SEQ * D * I * 2
    flops = B * (2 * SEQ * CPP * D + L * layer_flops)
    transcendentals = B * (SEQ + L * (HEADS * SEQ * SEQ + SEQ * I + 2 * SEQ))
    weight_bytes = L * (4 * D * D + 2 * D * I) * 2 + L * (8 * D + I) * 4
    bytes_accessed = (B * SEQ * CPP * 2 + CPP * D * 2 + SEQ * D * 4
                      + B * weight_bytes + B * SEQ * D * 4)

    hidden = pl.pallas_call(
        _clip_tower_kernel,
        grid=(B, L),
        in_specs=in_specs,
        out_specs=out_spec,
        out_shape=jax.ShapeDtypeStruct((B, SEQ, D), jnp.float32),
        compiler_params=pltpu.CompilerParams(
            dimension_semantics=("parallel", "arbitrary"),
            vmem_limit_bytes=32 * 1024 * 1024),
        cost_estimate=pl.CostEstimate(flops=flops,
                                      transcendentals=transcendentals,
                                      bytes_accessed=bytes_accessed),
    )(*kernel_inputs)

    # ---- feature_select ----
    feats = hidden
    if SELECT_FEATURE == "patch":
        feats = feats[:, 1:]
    elif SELECT_FEATURE != "cls_patch":
        raise ValueError(f"Unexpected select feature: {SELECT_FEATURE}")
    return feats.astype(images.dtype)


def clip_vision_tower_forward(images, params):
    """Mirrors CLIPVisionTower.forward: tensor input or list of images."""
    if isinstance(images, (list, tuple)):
        return [_forward_batched(im[None], params) for im in images]
    return _forward_batched(images, params)


# ----------------------------------- main --------------------------------------
if __name__ == "__main__":
    key = jax.random.PRNGKey(0)
    pkey, ikey = jax.random.split(key)
    params = init_params(pkey)
    images = jax.random.normal(ikey, (2, CHANNELS, IMAGE_SIZE, IMAGE_SIZE),
                               dtype=jnp.float32)

    fwd = jax.jit(lambda imgs: clip_vision_tower_forward(imgs, params))
    feats = jax.block_until_ready(fwd(images))
    assert feats.shape == (2, NUM_PATCHES, HIDDEN), feats.shape
    assert feats.dtype == images.dtype
    print("KERNEL_OK")
</pallas_src>

<mosaic_0001>
module attributes {stable_mosaic.version = 11 : i64} {
  func.func @_clip_tower_kernel(%arg0: i32, %arg1: i32, %arg2: memref<1x5x192xbf16, #tpu.memory_space<vmem>>, %arg3: memref<192x32xbf16, #tpu.memory_space<vmem>>, %arg4: memref<5x32xf32, #tpu.memory_space<vmem>>, %arg5: memref<1x32xf32, #tpu.memory_space<vmem>>, %arg6: memref<1x32xf32, #tpu.memory_space<vmem>>, %arg7: memref<1x1x32xf32, #tpu.memory_space<vmem>>, %arg8: memref<1x1x32xf32, #tpu.memory_space<vmem>>, %arg9: memref<1x32x32xbf16, #tpu.memory_space<vmem>>, %arg10: memref<1x1x32xf32, #tpu.memory_space<vmem>>, %arg11: memref<1x32x32xbf16, #tpu.memory_space<vmem>>, %arg12: memref<1x1x32xf32, #tpu.memory_space<vmem>>, %arg13: memref<1x32x32xbf16, #tpu.memory_space<vmem>>, %arg14: memref<1x1x32xf32, #tpu.memory_space<vmem>>, %arg15: memref<1x32x32xbf16, #tpu.memory_space<vmem>>, %arg16: memref<1x1x32xf32, #tpu.memory_space<vmem>>, %arg17: memref<1x1x32xf32, #tpu.memory_space<vmem>>, %arg18: memref<1x1x32xf32, #tpu.memory_space<vmem>>, %arg19: memref<1x32x64xbf16, #tpu.memory_space<vmem>>, %arg20: memref<1x1x64xf32, #tpu.memory_space<vmem>>, %arg21: memref<1x64x32xbf16, #tpu.memory_space<vmem>>, %arg22: memref<1x1x32xf32, #tpu.memory_space<vmem>>, %arg23: memref<1x5x32xf32, #tpu.memory_space<vmem>>) attributes {dimension_semantics = [#tpu.dimension_semantics<parallel>, #tpu.dimension_semantics<arbitrary>], iteration_bounds = array<i64: 2, 2>, scalar_prefetch = 0 : i64, scratch_operands = 0 : i64, tpu.core_type = #tpu.core_type<tc>, window_params = [{transform_indices = @transform_0, window_bounds = array<i64: 1, 5, 192>}, {pipeline_mode = #tpu.pipeline_mode<synchronous>, transform_indices = @transform_1, window_bounds = array<i64: 192, 32>}, {pipeline_mode = #tpu.pipeline_mode<synchronous>, transform_indices = @transform_2, window_bounds = array<i64: 5, 32>}, {pipeline_mode = #tpu.pipeline_mode<synchronous>, transform_indices = @transform_3, window_bounds = array<i64: 1, 32>}, {pipeline_mode = #tpu.pipeline_mode<synchronous>, transform_indices = @transform_4, window_bounds = array<i64: 1, 32>}, {transform_indices = @transform_5, window_bounds = array<i64: 1, 1, 32>}, {transform_indices = @transform_6, window_bounds = array<i64: 1, 1, 32>}, {transform_indices = @transform_7, window_bounds = array<i64: 1, 32, 32>}, {transform_indices = @transform_8, window_bounds = array<i64: 1, 1, 32>}, {transform_indices = @transform_9, window_bounds = array<i64: 1, 32, 32>}, {transform_indices = @transform_10, window_bounds = array<i64: 1, 1, 32>}, {transform_indices = @transform_11, window_bounds = array<i64: 1, 32, 32>}, {transform_indices = @transform_12, window_bounds = array<i64: 1, 1, 32>}, {transform_indices = @transform_13, window_bounds = array<i64: 1, 32, 32>}, {transform_indices = @transform_14, window_bounds = array<i64: 1, 1, 32>}, {transform_indices = @transform_15, window_bounds = array<i64: 1, 1, 32>}, {transform_indices = @transform_16, window_bounds = array<i64: 1, 1, 32>}, {transform_indices = @transform_17, window_bounds = array<i64: 1, 32, 64>}, {transform_indices = @transform_18, window_bounds = array<i64: 1, 1, 64>}, {transform_indices = @transform_19, window_bounds = array<i64: 1, 64, 32>}, {transform_indices = @transform_20, window_bounds = array<i64: 1, 1, 32>}, {transform_indices = @transform_21, window_bounds = array<i64: 1, 5, 32>}]} {
    %c0_i32 = arith.constant 0 : i32
    %0 = arith.cmpi eq, %arg1, %c0_i32 : i32
    %1 = arith.extui %0 : i1 to i32
    %c0_i32_0 = arith.constant 0 : i32
    %2 = arith.cmpi ne, %1, %c0_i32_0 : i32
    scf.if %2 {
      %c0_87 = arith.constant 0 : index
      %c0_88 = arith.constant 0 : index
      %c0_89 = arith.constant 0 : index
      %179 = vector.load %arg2[%c0_87, %c0_88, %c0_89] : memref<1x5x192xbf16, #tpu.memory_space<vmem>>, vector<1x5x192xbf16>
      %180 = vector.shape_cast %179 : vector<1x5x192xbf16> to vector<5x192xbf16>
      %c0_90 = arith.constant 0 : index
      %c0_91 = arith.constant 0 : index
      %181 = vector.load %arg3[%c0_90, %c0_91] : memref<192x32xbf16, #tpu.memory_space<vmem>>, vector<192x32xbf16>
      %cst_92 = arith.constant dense<0.000000e+00> : vector<5x32xf32>
      %182 = tpu.matmul %180, %181, %cst_92 {dimension_numbers = #tpu.dot_dimension_numbers<[1], [0], [0], [1], [0, 0, 1, 1], [], []>} : vector<5x192xbf16>, vector<192x32xbf16>, vector<5x32xf32> -> vector<5x32xf32>
      %c0_93 = arith.constant 0 : index
      %c0_94 = arith.constant 0 : index
      %183 = vector.load %arg4[%c0_93, %c0_94] : memref<5x32xf32, #tpu.memory_space<vmem>>, vector<5x32xf32>
      %184 = arith.addf %182, %183 : vector<5x32xf32>
      %cst_95 = arith.constant dense<0.000000e+00> : vector<5xf32>
      %185 = vector.multi_reduction <add>, %184, %cst_95 [1] : vector<5x32xf32> to vector<5xf32>
      %186 = vector.shape_cast %185 : vector<5xf32> to vector<5x1xf32>
      %cst_96 = arith.constant 3.200000e+01 : f32
      %187 = vector.broadcast %cst_96 : f32 to vector<5x1xf32>
      %188 = arith.divf %186, %187 : vector<5x1xf32>
      %189 = vector.broadcast %188 : vector<5x1xf32> to vector<5x32xf32>
      %190 = arith.subf %184, %189 : vector<5x32xf32>
      %191 = arith.mulf %190, %190 : vector<5x32xf32>
      %cst_97 = arith.constant dense<0.000000e+00> : vector<5xf32>
      %192 = vector.multi_reduction <add>, %191, %cst_97 [1] : vector<5x32xf32> to vector<5xf32>
      %193 = vector.shape_cast %192 : vector<5xf32> to vector<5x1xf32>
      %cst_98 = arith.constant 3.200000e+01 : f32
      %194 = vector.broadcast %cst_98 : f32 to vector<5x1xf32>
      %195 = arith.divf %193, %194 : vector<5x1xf32>
      %196 = vector.broadcast %188 : vector<5x1xf32> to vector<5x32xf32>
      %197 = arith.subf %184, %196 : vector<5x32xf32>
      %cst_99 = arith.constant 9.99999974E-6 : f32
      %198 = vector.broadcast %cst_99 : f32 to vector<5x1xf32>
      %199 = arith.addf %195, %198 : vector<5x1xf32>
      %200 = math.rsqrt %199 : vector<5x1xf32>
      %201 = vector.broadcast %200 : vector<5x1xf32> to vector<5x32xf32>
      %202 = arith.mulf %197, %201 : vector<5x32xf32>
      %c0_100 = arith.constant 0 : index
      %c0_101 = arith.constant 0 : index
      %203 = vector.load %arg5[%c0_100, %c0_101] : memref<1x32xf32, #tpu.memory_space<vmem>>, vector<1x32xf32>
      %204 = vector.broadcast %203 : vector<1x32xf32> to vector<5x32xf32>
      %205 = arith.mulf %202, %204 : vector<5x32xf32>
      %c0_102 = arith.constant 0 : index
      %c0_103 = arith.constant 0 : index
      %206 = vector.load %arg6[%c0_102, %c0_103] : memref<1x32xf32, #tpu.memory_space<vmem>>, vector<1x32xf32>
      %207 = vector.broadcast %206 : vector<1x32xf32> to vector<5x32xf32>
      %208 = arith.addf %205, %207 : vector<5x32xf32>
      %c0_104 = arith.constant 0 : index
      %c0_105 = arith.constant 0 : index
      %c0_106 = arith.constant 0 : index
      %209 = vector.load %arg23[%c0_104, %c0_105, %c0_106] : memref<1x5x32xf32, #tpu.memory_space<vmem>>, vector<1x5x32xf32>
      %210 = vector.shape_cast %209 : vector<1x5x32xf32> to vector<5x32xf32>
      %211 = vector.shape_cast %208 : vector<5x32xf32> to vector<1x5x32xf32>
      tpu.vector_store %arg23[%c0_104, %c0_105, %c0_106], %211 {strides = array<i32>} : memref<1x5x32xf32, #tpu.memory_space<vmem>>, vector<1x5x32xf32>,
    } else {
    }
    %c0 = arith.constant 0 : index
    %c0_1 = arith.constant 0 : index
    %c0_2 = arith.constant 0 : index
    %3 = vector.load %arg23[%c0, %c0_1, %c0_2] : memref<1x5x32xf32, #tpu.memory_space<vmem>>, vector<1x5x32xf32>
    %4 = vector.shape_cast %3 : vector<1x5x32xf32> to vector<5x32xf32>
    %cst = arith.constant dense<0.000000e+00> : vector<5xf32>
    %5 = vector.multi_reduction <add>, %4, %cst [1] : vector<5x32xf32> to vector<5xf32>
    %6 = vector.shape_cast %5 : vector<5xf32> to vector<5x1xf32>
    %cst_3 = arith.constant 3.200000e+01 : f32
    %7 = vector.broadcast %cst_3 : f32 to vector<5x1xf32>
    %8 = arith.divf %6, %7 : vector<5x1xf32>
    %9 = vector.broadcast %8 : vector<5x1xf32> to vector<5x32xf32>
    %10 = arith.subf %4, %9 : vector<5x32xf32>
    %11 = arith.mulf %10, %10 : vector<5x32xf32>
    %cst_4 = arith.constant dense<0.000000e+00> : vector<5xf32>
    %12 = vector.multi_reduction <add>, %11, %cst_4 [1] : vector<5x32xf32> to vector<5xf32>
    %13 = vector.shape_cast %12 : vector<5xf32> to vector<5x1xf32>
    %cst_5 = arith.constant 3.200000e+01 : f32
    %14 = vector.broadcast %cst_5 : f32 to vector<5x1xf32>
    %15 = arith.divf %13, %14 : vector<5x1xf32>
    %16 = vector.broadcast %8 : vector<5x1xf32> to vector<5x32xf32>
    %17 = arith.subf %4, %16 : vector<5x32xf32>
    %cst_6 = arith.constant 9.99999974E-6 : f32
    %18 = vector.broadcast %cst_6 : f32 to vector<5x1xf32>
    %19 = arith.addf %15, %18 : vector<5x1xf32>
    %20 = math.rsqrt %19 : vector<5x1xf32>
    %21 = vector.broadcast %20 : vector<5x1xf32> to vector<5x32xf32>
    %22 = arith.mulf %17, %21 : vector<5x32xf32>
    %c0_7 = arith.constant 0 : index
    %c0_8 = arith.constant 0 : index
    %c0_9 = arith.constant 0 : index
    %23 = vector.load %arg7[%c0_7, %c0_8, %c0_9] : memref<1x1x32xf32, #tpu.memory_space<vmem>>, vector<1x1x32xf32>
    %24 = vector.shape_cast %23 : vector<1x1x32xf32> to vector<1x32xf32>
    %25 = vector.broadcast %24 : vector<1x32xf32> to vector<5x32xf32>
    %26 = arith.mulf %22, %25 : vector<5x32xf32>
    %c0_10 = arith.constant 0 : index
    %c0_11 = arith.constant 0 : index
    %c0_12 = arith.constant 0 : index
    %27 = vector.load %arg8[%c0_10, %c0_11, %c0_12] : memref<1x1x32xf32, #tpu.memory_space<vmem>>, vector<1x1x32xf32>
    %28 = vector.shape_cast %27 : vector<1x1x32xf32> to vector<1x32xf32>
    %29 = vector.broadcast %28 : vector<1x32xf32> to vector<5x32xf32>
    %30 = arith.addf %26, %29 : vector<5x32xf32>
    %31 = arith.truncf %30 : vector<5x32xf32> to vector<5x32xbf16>
    %c0_13 = arith.constant 0 : index
    %c0_14 = arith.constant 0 : index
    %c0_15 = arith.constant 0 : index
    %32 = vector.load %arg9[%c0_13, %c0_14, %c0_15] : memref<1x32x32xbf16, #tpu.memory_space<vmem>>, vector<1x32x32xbf16>
    %33 = vector.shape_cast %32 : vector<1x32x32xbf16> to vector<32x32xbf16>
    %cst_16 = arith.constant dense<0.000000e+00> : vector<5x32xf32>
    %34 = tpu.matmul %31, %33, %cst_16 {dimension_numbers = #tpu.dot_dimension_numbers<[1], [0], [0], [1], [0, 0, 1, 1], [], []>} : vector<5x32xbf16>, vector<32x32xbf16>, vector<5x32xf32> -> vector<5x32xf32>
    %c0_17 = arith.constant 0 : index
    %c0_18 = arith.constant 0 : index
    %c0_19 = arith.constant 0 : index
    %35 = vector.load %arg10[%c0_17, %c0_18, %c0_19] : memref<1x1x32xf32, #tpu.memory_space<vmem>>, vector<1x1x32xf32>
    %36 = vector.shape_cast %35 : vector<1x1x32xf32> to vector<1x32xf32>
    %37 = vector.broadcast %36 : vector<1x32xf32> to vector<5x32xf32>
    %38 = arith.addf %34, %37 : vector<5x32xf32>
    %39 = arith.truncf %30 : vector<5x32xf32> to vector<5x32xbf16>
    %c0_20 = arith.constant 0 : index
    %c0_21 = arith.constant 0 : index
    %c0_22 = arith.constant 0 : index
    %40 = vector.load %arg11[%c0_20, %c0_21, %c0_22] : memref<1x32x32xbf16, #tpu.memory_space<vmem>>, vector<1x32x32xbf16>
    %41 = vector.shape_cast %40 : vector<1x32x32xbf16> to vector<32x32xbf16>
    %cst_23 = arith.constant dense<0.000000e+00> : vector<5x32xf32>
    %42 = tpu.matmul %39, %41, %cst_23 {dimension_numbers = #tpu.dot_dimension_numbers<[1], [0], [0], [1], [0, 0, 1, 1], [], []>} : vector<5x32xbf16>, vector<32x32xbf16>, vector<5x32xf32> -> vector<5x32xf32>
    %c0_24 = arith.constant 0 : index
    %c0_25 = arith.constant 0 : index
    %c0_26 = arith.constant 0 : index
    %43 = vector.load %arg12[%c0_24, %c0_25, %c0_26] : memref<1x1x32xf32, #tpu.memory_space<vmem>>, vector<1x1x32xf32>
    %44 = vector.shape_cast %43 : vector<1x1x32xf32> to vector<1x32xf32>
    %45 = vector.broadcast %44 : vector<1x32xf32> to vector<5x32xf32>
    %46 = arith.addf %42, %45 : vector<5x32xf32>
    %47 = arith.truncf %30 : vector<5x32xf32> to vector<5x32xbf16>
    %c0_27 = arith.constant 0 : index
    %c0_28 = arith.constant 0 : index
    %c0_29 = arith.constant 0 : index
    %48 = vector.load %arg13[%c0_27, %c0_28, %c0_29] : memref<1x32x32xbf16, #tpu.memory_space<vmem>>, vector<1x32x32xbf16>
    %49 = vector.shape_cast %48 : vector<1x32x32xbf16> to vector<32x32xbf16>
    %cst_30 = arith.constant dense<0.000000e+00> : vector<5x32xf32>
    %50 = tpu.matmul %47, %49, %cst_30 {dimension_numbers = #tpu.dot_dimension_numbers<[1], [0], [0], [1], [0, 0, 1, 1], [], []>} : vector<5x32xbf16>, vector<32x32xbf16>, vector<5x32xf32> -> vector<5x32xf32>
    %c0_31 = arith.constant 0 : index
    %c0_32 = arith.constant 0 : index
    %c0_33 = arith.constant 0 : index
    %51 = vector.load %arg14[%c0_31, %c0_32, %c0_33] : memref<1x1x32xf32, #tpu.memory_space<vmem>>, vector<1x1x32xf32>
    %52 = vector.shape_cast %51 : vector<1x1x32xf32> to vector<1x32xf32>
    %53 = vector.broadcast %52 : vector<1x32xf32> to vector<5x32xf32>
    %54 = arith.addf %50, %53 : vector<5x32xf32>
    %55 = vector.extract_strided_slice %38 {offsets = [0, 0], sizes = [5, 8], strides = [1, 1]} : vector<5x32xf32> to vector<5x8xf32>
    %56 = vector.extract_strided_slice %46 {offsets = [0, 0], sizes = [5, 8], strides = [1, 1]} : vector<5x32xf32> to vector<5x8xf32>
    %57 = vector.extract_strided_slice %54 {offsets = [0, 0], sizes = [5, 8], strides = [1, 1]} : vector<5x32xf32> to vector<5x8xf32>
    %cst_34 = arith.constant dense<0.000000e+00> : vector<5x5xf32>
    %58 = tpu.matmul %55, %56, %cst_34 {dimension_numbers = #tpu.dot_dimension_numbers<[1], [1], [0], [0], [0, 0, 1, 0], [], []>} : vector<5x8xf32>, vector<5x8xf32>, vector<5x5xf32> -> vector<5x5xf32>
    %cst_35 = arith.constant dense<0xFF800000> : vector<5xf32>
    %59 = vector.multi_reduction <maximumf>, %58, %cst_35 [1] : vector<5x5xf32> to vector<5xf32>
    %60 = vector.shape_cast %59 : vector<5xf32> to vector<5x1xf32>
    %61 = vector.broadcast %60 : vector<5x1xf32> to vector<5x5xf32>
    %62 = arith.subf %58, %61 : vector<5x5xf32>
    %63 = math.exp %62 : vector<5x5xf32>
    %cst_36 = arith.constant dense<0.000000e+00> : vector<5xf32>
    %64 = vector.multi_reduction <add>, %63, %cst_36 [1] : vector<5x5xf32> to vector<5xf32>
    %65 = vector.shape_cast %64 : vector<5xf32> to vector<5x1xf32>
    %66 = tpu.reciprocal %65 {approx = true} : vector<5x1xf32> -> vector<5x1xf32>
    %67 = vector.broadcast %66 : vector<5x1xf32> to vector<5x5xf32>
    %68 = arith.mulf %63, %67 : vector<5x5xf32>
    %cst_37 = arith.constant dense<0.000000e+00> : vector<5x8xf32>
    %69 = tpu.matmul %68, %57, %cst_37 {dimension_numbers = #tpu.dot_dimension_numbers<[1], [0], [0], [1], [0, 0, 1, 1], [], []>} : vector<5x5xf32>, vector<5x8xf32>, vector<5x8xf32> -> vector<5x8xf32>
    %70 = vector.extract_strided_slice %38 {offsets = [0, 8], sizes = [5, 8], strides = [1, 1]} : vector<5x32xf32> to vector<5x8xf32>
    %71 = vector.extract_strided_slice %46 {offsets = [0, 8], sizes = [5, 8], strides = [1, 1]} : vector<5x32xf32> to vector<5x8xf32>
    %72 = vector.extract_strided_slice %54 {offsets = [0, 8], sizes = [5, 8], strides = [1, 1]} : vector<5x32xf32> to vector<5x8xf32>
    %cst_38 = arith.constant dense<0.000000e+00> : vector<5x5xf32>
    %73 = tpu.matmul %70, %71, %cst_38 {dimension_numbers = #tpu.dot_dimension_numbers<[1], [1], [0], [0], [0, 0, 1, 0], [], []>} : vector<5x8xf32>, vector<5x8xf32>, vector<5x5xf32> -> vector<5x5xf32>
    %cst_39 = arith.constant dense<0xFF800000> : vector<5xf32>
    %74 = vector.multi_reduction <maximumf>, %73, %cst_39 [1] : vector<5x5xf32> to vector<5xf32>
    %75 = vector.shape_cast %74 : vector<5xf32> to vector<5x1xf32>
    %76 = vector.broadcast %75 : vector<5x1xf32> to vector<5x5xf32>
    %77 = arith.subf %73, %76 : vector<5x5xf32>
    %78 = math.exp %77 : vector<5x5xf32>
    %cst_40 = arith.constant dense<0.000000e+00> : vector<5xf32>
    %79 = vector.multi_reduction <add>, %78, %cst_40 [1] : vector<5x5xf32> to vector<5xf32>
    %80 = vector.shape_cast %79 : vector<5xf32> to vector<5x1xf32>
    %81 = tpu.reciprocal %80 {approx = true} : vector<5x1xf32> -> vector<5x1xf32>
    %82 = vector.broadcast %81 : vector<5x1xf32> to vector<5x5xf32>
    %83 = arith.mulf %78, %82 : vector<5x5xf32>
    %cst_41 = arith.constant dense<0.000000e+00> : vector<5x8xf32>
    %84 = tpu.matmul %83, %72, %cst_41 {dimension_numbers = #tpu.dot_dimension_numbers<[1], [0], [0], [1], [0, 0, 1, 1], [], []>} : vector<5x5xf32>, vector<5x8xf32>, vector<5x8xf32> -> vector<5x8xf32>
    %85 = vector.extract_strided_slice %38 {offsets = [0, 16], sizes = [5, 8], strides = [1, 1]} : vector<5x32xf32> to vector<5x8xf32>
    %86 = vector.extract_strided_slice %46 {offsets = [0, 16], sizes = [5, 8], strides = [1, 1]} : vector<5x32xf32> to vector<5x8xf32>
    %87 = vector.extract_strided_slice %54 {offsets = [0, 16], sizes = [5, 8], strides = [1, 1]} : vector<5x32xf32> to vector<5x8xf32>
    %cst_42 = arith.constant dense<0.000000e+00> : vector<5x5xf32>
    %88 = tpu.matmul %85, %86, %cst_42 {dimension_numbers = #tpu.dot_dimension_numbers<[1], [1], [0], [0], [0, 0, 1, 0], [], []>} : vector<5x8xf32>, vector<5x8xf32>, vector<5x5xf32> -> vector<5x5xf32>
    %cst_43 = arith.constant dense<0xFF800000> : vector<5xf32>
    %89 = vector.multi_reduction <maximumf>, %88, %cst_43 [1] : vector<5x5xf32> to vector<5xf32>
    %90 = vector.shape_cast %89 : vector<5xf32> to vector<5x1xf32>
    %91 = vector.broadcast %90 : vector<5x1xf32> to vector<5x5xf32>
    %92 = arith.subf %88, %91 : vector<5x5xf32>
    %93 = math.exp %92 : vector<5x5xf32>
    %cst_44 = arith.constant dense<0.000000e+00> : vector<5xf32>
    %94 = vector.multi_reduction <add>, %93, %cst_44 [1] : vector<5x5xf32> to vector<5xf32>
    %95 = vector.shape_cast %94 : vector<5xf32> to vector<5x1xf32>
    %96 = tpu.reciprocal %95 {approx = true} : vector<5x1xf32> -> vector<5x1xf32>
    %97 = vector.broadcast %96 : vector<5x1xf32> to vector<5x5xf32>
    %98 = arith.mulf %93, %97 : vector<5x5xf32>
    %cst_45 = arith.constant dense<0.000000e+00> : vector<5x8xf32>
    %99 = tpu.matmul %98, %87, %cst_45 {dimension_numbers = #tpu.dot_dimension_numbers<[1], [0], [0], [1], [0, 0, 1, 1], [], []>} : vector<5x5xf32>, vector<5x8xf32>, vector<5x8xf32> -> vector<5x8xf32>
    %100 = vector.extract_strided_slice %38 {offsets = [0, 24], sizes = [5, 8], strides = [1, 1]} : vector<5x32xf32> to vector<5x8xf32>
    %101 = vector.extract_strided_slice %46 {offsets = [0, 24], sizes = [5, 8], strides = [1, 1]} : vector<5x32xf32> to vector<5x8xf32>
    %102 = vector.extract_strided_slice %54 {offsets = [0, 24], sizes = [5, 8], strides = [1, 1]} : vector<5x32xf32> to vector<5x8xf32>
    %cst_46 = arith.constant dense<0.000000e+00> : vector<5x5xf32>
    %103 = tpu.matmul %100, %101, %cst_46 {dimension_numbers = #tpu.dot_dimension_numbers<[1], [1], [0], [0], [0, 0, 1, 0], [], []>} : vector<5x8xf32>, vector<5x8xf32>, vector<5x5xf32> -> vector<5x5xf32>
    %cst_47 = arith.constant dense<0xFF800000> : vector<5xf32>
    %104 = vector.multi_reduction <maximumf>, %103, %cst_47 [1] : vector<5x5xf32> to vector<5xf32>
    %105 = vector.shape_cast %104 : vector<5xf32> to vector<5x1xf32>
    %106 = vector.broadcast %105 : vector<5x1xf32> to vector<5x5xf32>
    %107 = arith.subf %103, %106 : vector<5x5xf32>
    %108 = math.exp %107 : vector<5x5xf32>
    %cst_48 = arith.constant dense<0.000000e+00> : vector<5xf32>
    %109 = vector.multi_reduction <add>, %108, %cst_48 [1] : vector<5x5xf32> to vector<5xf32>
    %110 = vector.shape_cast %109 : vector<5xf32> to vector<5x1xf32>
    %111 = tpu.reciprocal %110 {approx = true} : vector<5x1xf32> -> vector<5x1xf32>
    %112 = vector.broadcast %111 : vector<5x1xf32> to vector<5x5xf32>
    %113 = arith.mulf %108, %112 : vector<5x5xf32>
    %cst_49 = arith.constant dense<0.000000e+00> : vector<5x8xf32>
    %114 = tpu.matmul %113, %102, %cst_49 {dimension_numbers = #tpu.dot_dimension_numbers<[1], [0], [0], [1], [0, 0, 1, 1], [], []>} : vector<5x5xf32>, vector<5x8xf32>, vector<5x8xf32> -> vector<5x8xf32>
    %115 = tpu.concatenate %69, %84, %99, %114 in 1 : vector<5x8xf32>, vector<5x8xf32>, vector<5x8xf32>, vector<5x8xf32> -> vector<5x32xf32>
    %116 = arith.truncf %115 : vector<5x32xf32> to vector<5x32xbf16>
    %c0_50 = arith.constant 0 : index
    %c0_51 = arith.constant 0 : index
    %c0_52 = arith.constant 0 : index
    %117 = vector.load %arg15[%c0_50, %c0_51, %c0_52] : memref<1x32x32xbf16, #tpu.memory_space<vmem>>, vector<1x32x32xbf16>
    %118 = vector.shape_cast %117 : vector<1x32x32xbf16> to vector<32x32xbf16>
    %cst_53 = arith.constant dense<0.000000e+00> : vector<5x32xf32>
    %119 = tpu.matmul %116, %118, %cst_53 {dimension_numbers = #tpu.dot_dimension_numbers<[1], [0], [0], [1], [0, 0, 1, 1], [], []>} : vector<5x32xbf16>, vector<32x32xbf16>, vector<5x32xf32> -> vector<5x32xf32>
    %c0_54 = arith.constant 0 : index
    %c0_55 = arith.constant 0 : index
    %c0_56 = arith.constant 0 : index
    %120 = vector.load %arg16[%c0_54, %c0_55, %c0_56] : memref<1x1x32xf32, #tpu.memory_space<vmem>>, vector<1x1x32xf32>
    %121 = vector.shape_cast %120 : vector<1x1x32xf32> to vector<1x32xf32>
    %122 = vector.broadcast %121 : vector<1x32xf32> to vector<5x32xf32>
    %123 = arith.addf %119, %122 : vector<5x32xf32>
    %124 = arith.addf %4, %123 : vector<5x32xf32>
    %cst_57 = arith.constant dense<0.000000e+00> : vector<5xf32>
    %125 = vector.multi_reduction <add>, %124, %cst_57 [1] : vector<5x32xf32> to vector<5xf32>
    %126 = vector.shape_cast %125 : vector<5xf32> to vector<5x1xf32>
    %cst_58 = arith.constant 3.200000e+01 : f32
    %127 = vector.broadcast %cst_58 : f32 to vector<5x1xf32>
    %128 = arith.divf %126, %127 : vector<5x1xf32>
    %129 = vector.broadcast %128 : vector<5x1xf32> to vector<5x32xf32>
    %130 = arith.subf %124, %129 : vector<5x32xf32>
    %131 = arith.mulf %130, %130 : vector<5x32xf32>
    %cst_59 = arith.constant dense<0.000000e+00> : vector<5xf32>
    %132 = vector.multi_reduction <add>, %131, %cst_59 [1] : vector<5x32xf32> to vector<5xf32>
    %133 = vector.shape_cast %132 : vector<5xf32> to vector<5x1xf32>
    %cst_60 = arith.constant 3.200000e+01 : f32
    %134 = vector.broadcast %cst_60 : f32 to vector<5x1xf32>
    %135 = arith.divf %133, %134 : vector<5x1xf32>
    %136 = vector.broadcast %128 : vector<5x1xf32> to vector<5x32xf32>
    %137 = arith.subf %124, %136 : vector<5x32xf32>
    %cst_61 = arith.constant 9.99999974E-6 : f32
    %138 = vector.broadcast %cst_61 : f32 to vector<5x1xf32>
    %139 = arith.addf %135, %138 : vector<5x1xf32>
    %140 = math.rsqrt %139 : vector<5x1xf32>
    %141 = vector.broadcast %140 : vector<5x1xf32> to vector<5x32xf32>
    %142 = arith.mulf %137, %141 : vector<5x32xf32>
    %c0_62 = arith.constant 0 : index
    %c0_63 = arith.constant 0 : index
    %c0_64 = arith.constant 0 : index
    %143 = vector.load %arg17[%c0_62, %c0_63, %c0_64] : memref<1x1x32xf32, #tpu.memory_space<vmem>>, vector<1x1x32xf32>
    %144 = vector.shape_cast %143 : vector<1x1x32xf32> to vector<1x32xf32>
    %145 = vector.broadcast %144 : vector<1x32xf32> to vector<5x32xf32>
    %146 = arith.mulf %142, %145 : vector<5x32xf32>
    %c0_65 = arith.constant 0 : index
    %c0_66 = arith.constant 0 : index
    %c0_67 = arith.constant 0 : index
    %147 = vector.load %arg18[%c0_65, %c0_66, %c0_67] : memref<1x1x32xf32, #tpu.memory_space<vmem>>, vector<1x1x32xf32>
    %148 = vector.shape_cast %147 : vector<1x1x32xf32> to vector<1x32xf32>
    %149 = vector.broadcast %148 : vector<1x32xf32> to vector<5x32xf32>
    %150 = arith.addf %146, %149 : vector<5x32xf32>
    %151 = arith.truncf %150 : vector<5x32xf32> to vector<5x32xbf16>
    %c0_68 = arith.constant 0 : index
    %c0_69 = arith.constant 0 : index
    %c0_70 = arith.constant 0 : index
    %152 = vector.load %arg19[%c0_68, %c0_69, %c0_70] : memref<1x32x64xbf16, #tpu.memory_space<vmem>>, vector<1x32x64xbf16>
    %153 = vector.shape_cast %152 : vector<1x32x64xbf16> to vector<32x64xbf16>
    %cst_71 = arith.constant dense<0.000000e+00> : vector<5x64xf32>
    %154 = tpu.matmul %151, %153, %cst_71 {dimension_numbers = #tpu.dot_dimension_numbers<[1], [0], [0], [1], [0, 0, 1, 1], [], []>} : vector<5x32xbf16>, vector<32x64xbf16>, vector<5x64xf32> -> vector<5x64xf32>
    %c0_72 = arith.constant 0 : index
    %c0_73 = arith.constant 0 : index
    %c0_74 = arith.constant 0 : index
    %155 = vector.load %arg20[%c0_72, %c0_73, %c0_74] : memref<1x1x64xf32, #tpu.memory_space<vmem>>, vector<1x1x64xf32>
    %156 = vector.shape_cast %155 : vector<1x1x64xf32> to vector<1x64xf32>
    %157 = vector.broadcast %156 : vector<1x64xf32> to vector<5x64xf32>
    %158 = arith.addf %154, %157 : vector<5x64xf32>
    %cst_75 = arith.constant 1.702000e+00 : f32
    %159 = vector.broadcast %cst_75 : f32 to vector<5x64xf32>
    %160 = arith.mulf %159, %158 : vector<5x64xf32>
    %161 = arith.negf %160 : vector<5x64xf32>
    %162 = math.exp %161 : vector<5x64xf32>
    %cst_76 = arith.constant 1.000000e+00 : f32
    %163 = vector.broadcast %cst_76 : f32 to vector<5x64xf32>
    %164 = arith.addf %163, %162 : vector<5x64xf32>
    %165 = arith.divf %163, %164 : vector<5x64xf32>
    %166 = arith.mulf %158, %165 : vector<5x64xf32>
    %167 = arith.truncf %166 : vector<5x64xf32> to vector<5x64xbf16>
    %c0_77 = arith.constant 0 : index
    %c0_78 = arith.constant 0 : index
    %c0_79 = arith.constant 0 : index
    %168 = vector.load %arg21[%c0_77, %c0_78, %c0_79] : memref<1x64x32xbf16, #tpu.memory_space<vmem>>, vector<1x64x32xbf16>
    %169 = vector.shape_cast %168 : vector<1x64x32xbf16> to vector<64x32xbf16>
    %cst_80 = arith.constant dense<0.000000e+00> : vector<5x32xf32>
    %170 = tpu.matmul %167, %169, %cst_80 {dimension_numbers = #tpu.dot_dimension_numbers<[1], [0], [0], [1], [0, 0, 1, 1], [], []>} : vector<5x64xbf16>, vector<64x32xbf16>, vector<5x32xf32> -> vector<5x32xf32>
    %c0_81 = arith.constant 0 : index
    %c0_82 = arith.constant 0 : index
    %c0_83 = arith.constant 0 : index
    %171 = vector.load %arg22[%c0_81, %c0_82, %c0_83] : memref<1x1x32xf32, #tpu.memory_space<vmem>>, vector<1x1x32xf32>
    %172 = vector.shape_cast %171 : vector<1x1x32xf32> to vector<1x32xf32>
    %173 = vector.broadcast %172 : vector<1x32xf32> to vector<5x32xf32>
    %174 = arith.addf %170, %173 : vector<5x32xf32>
    %175 = arith.addf %124, %174 : vector<5x32xf32>
    %c0_84 = arith.constant 0 : index
    %c0_85 = arith.constant 0 : index
    %c0_86 = arith.constant 0 : index
    %176 = vector.load %arg23[%c0_84, %c0_85, %c0_86] : memref<1x5x32xf32, #tpu.memory_space<vmem>>, vector<1x5x32xf32>
    %177 = vector.shape_cast %176 : vector<1x5x32xf32> to vector<5x32xf32>
    %178 = vector.shape_cast %175 : vector<5x32xf32> to vector<1x5x32xf32>
    tpu.vector_store %arg23[%c0_84, %c0_85, %c0_86], %178 {strides = array<i32>} : memref<1x5x32xf32, #tpu.memory_space<vmem>>, vector<1x5x32xf32>,
    return
  }
  func.func @transform_0(%arg0: i32, %arg1: i32) -> (i32, i32, i32) {
    %c0_i32 = arith.constant 0 : i32
    %c0_i32_0 = arith.constant 0 : i32
    %c0_i32_1 = arith.constant 0 : i32
    return %arg0, %c0_i32, %c0_i32_0 : i32, i32, i32
  }
  func.func @transform_1(%arg0: i32, %arg1: i32) -> (i32, i32) {
    %c0_i32 = arith.constant 0 : i32
    %c0_i32_0 = arith.constant 0 : i32
    %c0_i32_1 = arith.constant 0 : i32
    return %c0_i32, %c0_i32_0 : i32, i32
  }
  func.func @transform_2(%arg0: i32, %arg1: i32) -> (i32, i32) {
    %c0_i32 = arith.constant 0 : i32
    %c0_i32_0 = arith.constant 0 : i32
    %c0_i32_1 = arith.constant 0 : i32
    return %c0_i32, %c0_i32_0 : i32, i32
  }
  func.func @transform_3(%arg0: i32, %arg1: i32) -> (i32, i32) {
    %c0_i32 = arith.constant 0 : i32
    %c0_i32_0 = arith.constant 0 : i32
    %c0_i32_1 = arith.constant 0 : i32
    return %c0_i32, %c0_i32_0 : i32, i32
  }
  func.func @transform_4(%arg0: i32, %arg1: i32) -> (i32, i32) {
    %c0_i32 = arith.constant 0 : i32
    %c0_i32_0 = arith.constant 0 : i32
    %c0_i32_1 = arith.constant 0 : i32
    return %c0_i32, %c0_i32_0 : i32, i32
  }
  func.func @transform_5(%arg0: i32, %arg1: i32) -> (i32, i32, i32) {
    %c0_i32 = arith.constant 0 : i32
    %c0_i32_0 = arith.constant 0 : i32
    %c0_i32_1 = arith.constant 0 : i32
    return %arg1, %c0_i32, %c0_i32_0 : i32, i32, i32
  }
  func.func @transform_6(%arg0: i32, %arg1: i32) -> (i32, i32, i32) {
    %c0_i32 = arith.constant 0 : i32
    %c0_i32_0 = arith.constant 0 : i32
    %c0_i32_1 = arith.constant 0 : i32
    return %arg1, %c0_i32, %c0_i32_0 : i32, i32, i32
  }
  func.func @transform_7(%arg0: i32, %arg1: i32) -> (i32, i32, i32) {
    %c0_i32 = arith.constant 0 : i32
    %c0_i32_0 = arith.constant 0 : i32
    %c0_i32_1 = arith.constant 0 : i32
    return %arg1, %c0_i32, %c0_i32_0 : i32, i32, i32
  }
  func.func @transform_8(%arg0: i32, %arg1: i32) -> (i32, i32, i32) {
    %c0_i32 = arith.constant 0 : i32
    %c0_i32_0 = arith.constant 0 : i32
    %c0_i32_1 = arith.constant 0 : i32
    return %arg1, %c0_i32, %c0_i32_0 : i32, i32, i32
  }
  func.func @transform_9(%arg0: i32, %arg1: i32) -> (i32, i32, i32) {
    %c0_i32 = arith.constant 0 : i32
    %c0_i32_0 = arith.constant 0 : i32
    %c0_i32_1 = arith.constant 0 : i32
    return %arg1, %c0_i32, %c0_i32_0 : i32, i32, i32
  }
  func.func @transform_10(%arg0: i32, %arg1: i32) -> (i32, i32, i32) {
    %c0_i32 = arith.constant 0 : i32
    %c0_i32_0 = arith.constant 0 : i32
    %c0_i32_1 = arith.constant 0 : i32
    return %arg1, %c0_i32, %c0_i32_0 : i32, i32, i32
  }
  func.func @transform_11(%arg0: i32, %arg1: i32) -> (i32, i32, i32) {
    %c0_i32 = arith.constant 0 : i32
    %c0_i32_0 = arith.constant 0 : i32
    %c0_i32_1 = arith.constant 0 : i32
    return %arg1, %c0_i32, %c0_i32_0 : i32, i32, i32
  }
  func.func @transform_12(%arg0: i32, %arg1: i32) -> (i32, i32, i32) {
    %c0_i32 = arith.constant 0 : i32
    %c0_i32_0 = arith.constant 0 : i32
    %c0_i32_1 = arith.constant 0 : i32
    return %arg1, %c0_i32, %c0_i32_0 : i32, i32, i32
  }
  func.func @transform_13(%arg0: i32, %arg1: i32) -> (i32, i32, i32) {
    %c0_i32 = arith.constant 0 : i32
    %c0_i32_0 = arith.constant 0 : i32
    %c0_i32_1 = arith.constant 0 : i32
    return %arg1, %c0_i32, %c0_i32_0 : i32, i32, i32
  }
  func.func @transform_14(%arg0: i32, %arg1: i32) -> (i32, i32, i32) {
    %c0_i32 = arith.constant 0 : i32
    %c0_i32_0 = arith.constant 0 : i32
    %c0_i32_1 = arith.constant 0 : i32
    return %arg1, %c0_i32, %c0_i32_0 : i32, i32, i32
  }
  func.func @transform_15(%arg0: i32, %arg1: i32) -> (i32, i32, i32) {
    %c0_i32 = arith.constant 0 : i32
    %c0_i32_0 = arith.constant 0 : i32
    %c0_i32_1 = arith.constant 0 : i32
    return %arg1, %c0_i32, %c0_i32_0 : i32, i32, i32
  }
  func.func @transform_16(%arg0: i32, %arg1: i32) -> (i32, i32, i32) {
    %c0_i32 = arith.constant 0 : i32
    %c0_i32_0 = arith.constant 0 : i32
    %c0_i32_1 = arith.constant 0 : i32
    return %arg1, %c0_i32, %c0_i32_0 : i32, i32, i32
  }
  func.func @transform_17(%arg0: i32, %arg1: i32) -> (i32, i32, i32) {
    %c0_i32 = arith.constant 0 : i32
    %c0_i32_0 = arith.constant 0 : i32
    %c0_i32_1 = arith.constant 0 : i32
    return %arg1, %c0_i32, %c0_i32_0 : i32, i32, i32
  }
  func.func @transform_18(%arg0: i32, %arg1: i32) -> (i32, i32, i32) {
    %c0_i32 = arith.constant 0 : i32
    %c0_i32_0 = arith.constant 0 : i32
    %c0_i32_1 = arith.constant 0 : i32
    return %arg1, %c0_i32, %c0_i32_0 : i32, i32, i32
  }
  func.func @transform_19(%arg0: i32, %arg1: i32) -> (i32, i32, i32) {
    %c0_i32 = arith.constant 0 : i32
    %c0_i32_0 = arith.constant 0 : i32
    %c0_i32_1 = arith.constant 0 : i32
    return %arg1, %c0_i32, %c0_i32_0 : i32, i32, i32
  }
  func.func @transform_20(%arg0: i32, %arg1: i32) -> (i32, i32, i32) {
    %c0_i32 = arith.constant 0 : i32
    %c0_i32_0 = arith.constant 0 : i32
    %c0_i32_1 = arith.constant 0 : i32
    return %arg1, %c0_i32, %c0_i32_0 : i32, i32, i32
  }
  func.func @transform_21(%arg0: i32, %arg1: i32) -> (i32, i32, i32) {
    %c0_i32 = arith.constant 0 : i32
    %c0_i32_0 = arith.constant 0 : i32
    %c0_i32_1 = arith.constant 0 : i32
    return %arg0, %c0_i32, %c0_i32_0 : i32, i32, i32
  }
}

</mosaic_0001>

<llo_original>
// kernel: _lambda_.1
$region0: #{_lambda_.1}
  #allocation0 [shape = 'u32[]', space=smem, size = 0x4, offset = 0x4, fixed_abs, tag = 'smem constant byte address 0x4 - core index']
  #allocation1 [shape = 'u32[144,128]{1,0:T(1,128)}', space=vmem, size = 0x12000, scoped, tag = 'internal scratch']
  %s0 = inlined_call_operand.vmem [shape: bf16[2,5,192], index: 0, kind: input, shape index: {}]
  %s1 = inlined_call_operand.vmem [shape: bf16[192,32], index: 1, kind: input, shape index: {}]
  %s2 = inlined_call_operand.vmem [shape: f32[5,32], index: 2, kind: input, shape index: {}]
  %s3 = inlined_call_operand.vmem [shape: f32[1,32], index: 3, kind: input, shape index: {}]
  %s4 = inlined_call_operand.vmem [shape: f32[1,32], index: 4, kind: input, shape index: {}]
  %s5 = inlined_call_operand.vmem [shape: f32[2,1,32], index: 5, kind: input, shape index: {}, may-alias: {5,15}]
  %s6 = inlined_call_operand.vmem [shape: f32[2,1,32], index: 6, kind: input, shape index: {}, may-alias: {6,16}]
  %s7 = inlined_call_operand.vmem [shape: bf16[2,32,32], index: 7, kind: input, shape index: {}]
  %s8 = inlined_call_operand.vmem [shape: f32[2,1,32], index: 8, kind: input, shape index: {}]
  %s9 = inlined_call_operand.vmem [shape: bf16[2,32,32], index: 9, kind: input, shape index: {}]
  %s10 = inlined_call_operand.vmem [shape: f32[2,1,32], index: 10, kind: input, shape index: {}]
  %s11 = inlined_call_operand.vmem [shape: bf16[2,32,32], index: 11, kind: input, shape index: {}]
  %s12 = inlined_call_operand.vmem [shape: f32[2,1,32], index: 12, kind: input, shape index: {}]
  %s13 = inlined_call_operand.vmem [shape: bf16[2,32,32], index: 13, kind: input, shape index: {}]
  %s14 = inlined_call_operand.vmem [shape: f32[2,1,32], index: 14, kind: input, shape index: {}]
  %s15 = inlined_call_operand.vmem [shape: f32[2,1,32], index: 15, kind: input, shape index: {}, may-alias: {5,15}]
  %s16 = inlined_call_operand.vmem [shape: f32[2,1,32], index: 16, kind: input, shape index: {}, may-alias: {6,16}]
  %s17 = inlined_call_operand.vmem [shape: bf16[2,32,64], index: 17, kind: input, shape index: {}]
  %s18 = inlined_call_operand.vmem [shape: f32[2,1,64], index: 18, kind: input, shape index: {}]
  %s19 = inlined_call_operand.vmem [shape: bf16[2,64,32], index: 19, kind: input, shape index: {}]
  %s20 = inlined_call_operand.vmem [shape: f32[2,1,32], index: 20, kind: input, shape index: {}]
  %s21 = inlined_call_operand.vmem [shape: f32[2,5,32], index: 21, kind: output, shape index: {}]
  %s22 = sld [smem:[#allocation0]]
  $region121: #{_lambda_.1} parent=0
    _
  %s24 = ssub.s32 1, %s22
  %s25 = scalar_select 0, %s24, %s22
  loop: start=0, step=1, limit=6
  $region2: #{_lambda_.1} parent=0 // loop_pre_header
    _
  $region3: #{_lambda_.1} parent=0 // loop_header
    %s27 = sphi 0, %s31
    %p28 = scmp.ge.s32.totalorder %s27, 6
    %s34 = sphi 0, %s46
    %s35 = sphi 0, %s42
    %s36 = sphi 0, %s34
    %s37 = sphi 0, %s35
    %s38 = sphi 0, %s36
    %s39 = sphi 0, %s37
    %s49 = sphi 0, %s51
    %s52 = sphi 0, %s49
    %s53 = sphi 0, %s52
    %s69 = sphi 0, %s53
    %s73 = sphi 0, %s73
    %s75 = sphi 0, %s73
    %s76 = sphi 0, %s75
    %s90 = sphi 0, %s76
    %s94 = sphi 0, %s94
    %s96 = sphi 0, %s94
    %s97 = sphi 0, %s96
    %s111 = sphi 0, %s97
    %s115 = sphi 0, %s115
    %s117 = sphi 0, %s115
    %s118 = sphi 0, %s117
    %s132 = sphi 0, %s118
    %s136 = sphi 0, %s136
    %s138 = sphi 0, %s136
    %s139 = sphi 0, %s138
    %s153 = sphi 0, %s139
    %s159 = sphi 0, %s161
    %s162 = sphi 0, %s159
    %s163 = sphi 0, %s162
    %s179 = sphi 0, %s163
    %s185 = sphi 0, %s187
    %s188 = sphi 0, %s185
    %s189 = sphi 0, %s188
    %s205 = sphi 0, %s189
    %s211 = sphi 0, %s213
    %s214 = sphi 0, %s211
    %s215 = sphi 0, %s214
    %s231 = sphi 0, %s215
    %s237 = sphi 0, %s239
    %s240 = sphi 0, %s237
    %s241 = sphi 0, %s240
    %s257 = sphi 0, %s241
    %s263 = sphi 0, %s265
    %s266 = sphi 0, %s263
    %s267 = sphi 0, %s266
    %s283 = sphi 0, %s267
    %s289 = sphi 0, %s291
    %s292 = sphi 0, %s289
    %s293 = sphi 0, %s292
    %s309 = sphi 0, %s293
    %s315 = sphi 0, %s317
    %s318 = sphi 0, %s315
    %s319 = sphi 0, %s318
    %s335 = sphi 0, %s319
    %s341 = sphi 0, %s343
    %s344 = sphi 0, %s341
    %s345 = sphi 0, %s344
    %s361 = sphi 0, %s345
    %s367 = sphi 0, %s369
    %s370 = sphi 0, %s367
    %s371 = sphi 0, %s370
    %s387 = sphi 0, %s371
    %s393 = sphi 0, %s395
    %s396 = sphi 0, %s393
    %s397 = sphi 0, %s396
    %s413 = sphi 0, %s397
    %s419 = sphi 0, %s421
    %s422 = sphi 0, %s419
    %s423 = sphi 0, %s422
    %s439 = sphi 0, %s423
    %s445 = sphi 0, %s447
    %s448 = sphi 0, %s445
    %s449 = sphi 0, %s448
    %s465 = sphi 0, %s449
    %s471 = sphi 0, %s473
    %s474 = sphi 0, %s471
    %s475 = sphi 0, %s474
    %s491 = sphi 0, %s475
    %s497 = sphi 0, %s499
    %s500 = sphi 0, %s497
    %s501 = sphi 0, %s500
    %s517 = sphi 0, %s501
    %s523 = sphi 0, %s525
    %s526 = sphi 0, %s523
    %s527 = sphi 0, %s526
    %s543 = sphi 0, %s527
    %s549 = sphi 0, %s551
    %s552 = sphi 0, %s549
    %s553 = sphi 0, %s552
    %s569 = sphi 0, %s553
    %s575 = sphi 0, %s577
    %s578 = sphi 0, %s575
    %s579 = sphi 0, %s578
    %s595 = sphi 0, %s579
  $region4: #{_lambda_.1} parent=0 // loop_header_branch
    %30 = sbr.rel (%p28) target = $region8
  $region5: #{_lambda_.1} parent=0 // loop_body
    %s32 = ssub.s32 %s27, 1
    %s33 = ssub.s32 %s27, 2
    %s40 = sadd.s32 1, %s35
    %p41 = scmp.ge.s32.totalorder %s40, 2
    %s42 = scalar_select %p41, 0, %s40
    %s43 = sadd.s32 1, %s34
    %s44 = scalar_select %p41, %s43, %s34
    %p45 = scmp.ge.s32.totalorder %s44, 2
    %s46 = scalar_select %p45, 0, %s44
    %s47 = ssub.s32 %s34, %s46
    %p48 = scmp.eq.s32.totalorder %s47, 0
    %s50 = sadd.s32 %s49, 1
    %s51 = scalar_select %p48, %s49, %s50
    %p54 = pneg %p48
    %p55 = scmp.eq.s32.totalorder %s27, 3
    %p56 = por %p54, %p55
    %p57 = scmp.ne.s32.totalorder %s49, %s52
    %p58 = scmp.eq.s32.totalorder %s27, 0
    %p59 = por %p57, %p58
    %p60 = scmp.ne.s32.totalorder %s49, %s52
    %p61 = scmp.eq.s32.totalorder %s32, 3
    %p62 = por %p60, %p61
    %p63 = scmp.ne.s32.totalorder %s52, %s53
    %p64 = scmp.eq.s32.totalorder %s32, 0
    %p65 = por %p63, %p64
    %p66 = scmp.ne.s32.totalorder %s52, %s53
    %p67 = scmp.eq.s32.totalorder %s33, 3
    %p68 = por %p66, %p67
    %p70 = scmp.ne.s32.totalorder %s53, %s69
    %p71 = scmp.eq.s32.totalorder %s33, 0
    %p72 = por %p70, %p71
    %s74 = sadd.s32 %s73, 1
    %p77 = scmp.eq.s32.totalorder %s27, 3
    %p78 = scmp.ne.s32.totalorder %s73, %s75
    %p79 = scmp.eq.s32.totalorder %s27, 0
    %p80 = por %p78, %p79
    %p81 = scmp.ne.s32.totalorder %s73, %s75
    %p82 = scmp.eq.s32.totalorder %s32, 3
    %p83 = por %p81, %p82
    %p84 = scmp.ne.s32.totalorder %s75, %s76
    %p85 = scmp.eq.s32.totalorder %s32, 0
    %p86 = por %p84, %p85
    %p87 = scmp.ne.s32.totalorder %s75, %s76
    %p88 = scmp.eq.s32.totalorder %s33, 3
    %p89 = por %p87, %p88
    %p91 = scmp.ne.s32.totalorder %s76, %s90
    %p92 = scmp.eq.s32.totalorder %s33, 0
    %p93 = por %p91, %p92
    %s95 = sadd.s32 %s94, 1
    %p98 = scmp.eq.s32.totalorder %s27, 3
    %p99 = scmp.ne.s32.totalorder %s94, %s96
    %p100 = scmp.eq.s32.totalorder %s27, 0
    %p101 = por %p99, %p100
    %p102 = scmp.ne.s32.totalorder %s94, %s96
    %p103 = scmp.eq.s32.totalorder %s32, 3
    %p104 = por %p102, %p103
    %p105 = scmp.ne.s32.totalorder %s96, %s97
    %p106 = scmp.eq.s32.totalorder %s32, 0
    %p107 = por %p105, %p106
    %p108 = scmp.ne.s32.totalorder %s96, %s97
    %p109 = scmp.eq.s32.totalorder %s33, 3
    %p110 = por %p108, %p109
    %p112 = scmp.ne.s32.totalorder %s97, %s111
    %p113 = scmp.eq.s32.totalorder %s33, 0
    %p114 = por %p112, %p113
    %s116 = sadd.s32 %s115, 1
    %p119 = scmp.eq.s32.totalorder %s27, 3
    %p120 = scmp.ne.s32.totalorder %s115, %s117
    %p121 = scmp.eq.s32.totalorder %s27, 0
    %p122 = por %p120, %p121
    %p123 = scmp.ne.s32.totalorder %s115, %s117
    %p124 = scmp.eq.s32.totalorder %s32, 3
    %p125 = por %p123, %p124
    %p126 = scmp.ne.s32.totalorder %s117, %s118
    %p127 = scmp.eq.s32.totalorder %s32, 0
    %p128 = por %p126, %p127
    %p129 = scmp.ne.s32.totalorder %s117, %s118
    %p130 = scmp.eq.s32.totalorder %s33, 3
    %p131 = por %p129, %p130
    %p133 = scmp.ne.s32.totalorder %s118, %s132
    %p134 = scmp.eq.s32.totalorder %s33, 0
    %p135 = por %p133, %p134
    %s137 = sadd.s32 %s136, 1
    %p140 = scmp.eq.s32.totalorder %s27, 3
    %p141 = scmp.ne.s32.totalorder %s136, %s138
    %p142 = scmp.eq.s32.totalorder %s27, 0
    %p143 = por %p141, %p142
    %p144 = scmp.ne.s32.totalorder %s136, %s138
    %p145 = scmp.eq.s32.totalorder %s32, 3
    %p146 = por %p144, %p145
    %p147 = scmp.ne.s32.totalorder %s138, %s139
    %p148 = scmp.eq.s32.totalorder %s32, 0
    %p149 = por %p147, %p148
    %p150 = scmp.ne.s32.totalorder %s138, %s139
    %p151 = scmp.eq.s32.totalorder %s33, 3
    %p152 = por %p150, %p151
    %p154 = scmp.ne.s32.totalorder %s139, %s153
    %p155 = scmp.eq.s32.totalorder %s33, 0
    %p156 = por %p154, %p155
    %s157 = ssub.s32 %s35, %s42
    %p158 = scmp.eq.s32.totalorder %s157, 0
    %s160 = sadd.s32 %s159, 1
    %s161 = scalar_select %p158, %s159, %s160
    %p164 = pneg %p158
    %p165 = scmp.eq.s32.totalorder %s27, 3
    %p166 = por %p164, %p165
    %p167 = scmp.ne.s32.totalorder %s159, %s162
    %p168 = scmp.eq.s32.totalorder %s27, 0
    %p169 = por %p167, %p168
    %p170 = scmp.ne.s32.totalorder %s159, %s162
    %p171 = scmp.eq.s32.totalorder %s32, 3
    %p172 = por %p170, %p171
    %p173 = scmp.ne.s32.totalorder %s162, %s163
    %p174 = scmp.eq.s32.totalorder %s32, 0
    %p175 = por %p173, %p174
    %p176 = scmp.ne.s32.totalorder %s162, %s163
    %p177 = scmp.eq.s32.totalorder %s33, 3
    %p178 = por %p176, %p177
    %p180 = scmp.ne.s32.totalorder %s163, %s179
    %p181 = scmp.eq.s32.totalorder %s33, 0
    %p182 = por %p180, %p181
    %s183 = ssub.s32 %s35, %s42
    %p184 = scmp.eq.s32.totalorder %s183, 0
    %s186 = sadd.s32 %s185, 1
    %s187 = scalar_select %p184, %s185, %s186
    %p190 = pneg %p184
    %p191 = scmp.eq.s32.totalorder %s27, 3
    %p192 = por %p190, %p191
    %p193 = scmp.ne.s32.totalorder %s185, %s188
    %p194 = scmp.eq.s32.totalorder %s27, 0
    %p195 = por %p193, %p194
    %p196 = scmp.ne.s32.totalorder %s185, %s188
    %p197 = scmp.eq.s32.totalorder %s32, 3
    %p198 = por %p196, %p197
    %p199 = scmp.ne.s32.totalorder %s188, %s189
    %p200 = scmp.eq.s32.totalorder %s32, 0
    %p201 = por %p199, %p200
    %p202 = scmp.ne.s32.totalorder %s188, %s189
    %p203 = scmp.eq.s32.totalorder %s33, 3
    %p204 = por %p202, %p203
    %p206 = scmp.ne.s32.totalorder %s189, %s205
    %p207 = scmp.eq.s32.totalorder %s33, 0
    %p208 = por %p206, %p207
    %s209 = ssub.s32 %s35, %s42
    %p210 = scmp.eq.s32.totalorder %s209, 0
    %s212 = sadd.s32 %s211, 1
    %s213 = scalar_select %p210, %s211, %s212
    %p216 = pneg %p210
    %p217 = scmp.eq.s32.totalorder %s27, 3
    %p218 = por %p216, %p217
    %p219 = scmp.ne.s32.totalorder %s211, %s214
    %p220 = scmp.eq.s32.totalorder %s27, 0
    %p221 = por %p219, %p220
    %p222 = scmp.ne.s32.totalorder %s211, %s214
    %p223 = scmp.eq.s32.totalorder %s32, 3
    %p224 = por %p222, %p223
    %p225 = scmp.ne.s32.totalorder %s214, %s215
    %p226 = scmp.eq.s32.totalorder %s32, 0
    %p227 = por %p225, %p226
    %p228 = scmp.ne.s32.totalorder %s214, %s215
    %p229 = scmp.eq.s32.totalorder %s33, 3
    %p230 = por %p228, %p229
    %p232 = scmp.ne.s32.totalorder %s215, %s231
    %p233 = scmp.eq.s32.totalorder %s33, 0
    %p234 = por %p232, %p233
    %s235 = ssub.s32 %s35, %s42
    %p236 = scmp.eq.s32.totalorder %s235, 0
    %s238 = sadd.s32 %s237, 1
    %s239 = scalar_select %p236, %s237, %s238
    %p242 = pneg %p236
    %p243 = scmp.eq.s32.totalorder %s27, 3
    %p244 = por %p242, %p243
    %p245 = scmp.ne.s32.totalorder %s237, %s240
    %p246 = scmp.eq.s32.totalorder %s27, 0
    %p247 = por %p245, %p246
    %p248 = scmp.ne.s32.totalorder %s237, %s240
    %p249 = scmp.eq.s32.totalorder %s32, 3
    %p250 = por %p248, %p249
    %p251 = scmp.ne.s32.totalorder %s240, %s241
    %p252 = scmp.eq.s32.totalorder %s32, 0
    %p253 = por %p251, %p252
    %p254 = scmp.ne.s32.totalorder %s240, %s241
    %p255 = scmp.eq.s32.totalorder %s33, 3
    %p256 = por %p254, %p255
    %p258 = scmp.ne.s32.totalorder %s241, %s257
    %p259 = scmp.eq.s32.totalorder %s33, 0
    %p260 = por %p258, %p259
    %s261 = ssub.s32 %s35, %s42
    %p262 = scmp.eq.s32.totalorder %s261, 0
    %s264 = sadd.s32 %s263, 1
    %s265 = scalar_select %p262, %s263, %s264
    %p268 = pneg %p262
    %p269 = scmp.eq.s32.totalorder %s27, 3
    %p270 = por %p268, %p269
    %p271 = scmp.ne.s32.totalorder %s263, %s266
    %p272 = scmp.eq.s32.totalorder %s27, 0
    %p273 = por %p271, %p272
    %p274 = scmp.ne.s32.totalorder %s263, %s266
    %p275 = scmp.eq.s32.totalorder %s32, 3
    %p276 = por %p274, %p275
    %p277 = scmp.ne.s32.totalorder %s266, %s267
    %p278 = scmp.eq.s32.totalorder %s32, 0
    %p279 = por %p277, %p278
    %p280 = scmp.ne.s32.totalorder %s266, %s267
    %p281 = scmp.eq.s32.totalorder %s33, 3
    %p282 = por %p280, %p281
    %p284 = scmp.ne.s32.totalorder %s267, %s283
    %p285 = scmp.eq.s32.totalorder %s33, 0
    %p286 = por %p284, %p285
    %s287 = ssub.s32 %s35, %s42
    %p288 = scmp.eq.s32.totalorder %s287, 0
    %s290 = sadd.s32 %s289, 1
    %s291 = scalar_select %p288, %s289, %s290
    %p294 = pneg %p288
    %p295 = scmp.eq.s32.totalorder %s27, 3
    %p296 = por %p294, %p295
    %p297 = scmp.ne.s32.totalorder %s289, %s292
    %p298 = scmp.eq.s32.totalorder %s27, 0
    %p299 = por %p297, %p298
    %p300 = scmp.ne.s32.totalorder %s289, %s292
    %p301 = scmp.eq.s32.totalorder %s32, 3
    %p302 = por %p300, %p301
    %p303 = scmp.ne.s32.totalorder %s292, %s293
    %p304 = scmp.eq.s32.totalorder %s32, 0
    %p305 = por %p303, %p304
    %p306 = scmp.ne.s32.totalorder %s292, %s293
    %p307 = scmp.eq.s32.totalorder %s33, 3
    %p308 = por %p306, %p307
    %p310 = scmp.ne.s32.totalorder %s293, %s309
    %p311 = scmp.eq.s32.totalorder %s33, 0
    %p312 = por %p310, %p311
    %s313 = ssub.s32 %s35, %s42
    %p314 = scmp.eq.s32.totalorder %s313, 0
    %s316 = sadd.s32 %s315, 1
    %s317 = scalar_select %p314, %s315, %s316
    %p320 = pneg %p314
    %p321 = scmp.eq.s32.totalorder %s27, 3
    %p322 = por %p320, %p321
    %p323 = scmp.ne.s32.totalorder %s315, %s318
    %p324 = scmp.eq.s32.totalorder %s27, 0
    %p325 = por %p323, %p324
    %p326 = scmp.ne.s32.totalorder %s315, %s318
    %p327 = scmp.eq.s32.totalorder %s32, 3
    %p328 = por %p326, %p327
    %p329 = scmp.ne.s32.totalorder %s318, %s319
    %p330 = scmp.eq.s32.totalorder %s32, 0
    %p331 = por %p329, %p330
    %p332 = scmp.ne.s32.totalorder %s318, %s319
    %p333 = scmp.eq.s32.totalorder %s33, 3
    %p334 = por %p332, %p333
    %p336 = scmp.ne.s32.totalorder %s319, %s335
    %p337 = scmp.eq.s32.totalorder %s33, 0
    %p338 = por %p336, %p337
    %s339 = ssub.s32 %s35, %s42
    %p340 = scmp.eq.s32.totalorder %s339, 0
    %s342 = sadd.s32 %s341, 1
    %s343 = scalar_select %p340, %s341, %s342
    %p346 = pneg %p340
    %p347 = scmp.eq.s32.totalorder %s27, 3
    %p348 = por %p346, %p347
    %p349 = scmp.ne.s32.totalorder %s341, %s344
    %p350 = scmp.eq.s32.totalorder %s27, 0
    %p351 = por %p349, %p350
    %p352 = scmp.ne.s32.totalorder %s341, %s344
    %p353 = scmp.eq.s32.totalorder %s32, 3
    %p354 = por %p352, %p353
    %p355 = scmp.ne.s32.totalorder %s344, %s345
    %p356 = scmp.eq.s32.totalorder %s32, 0
    %p357 = por %p355, %p356
    %p358 = scmp.ne.s32.totalorder %s344, %s345
    %p359 = scmp.eq.s32.totalorder %s33, 3
    %p360 = por %p358, %p359
    %p362 = scmp.ne.s32.totalorder %s345, %s361
    %p363 = scmp.eq.s32.totalorder %s33, 0
    %p364 = por %p362, %p363
    %s365 = ssub.s32 %s35, %s42
    %p366 = scmp.eq.s32.totalorder %s365, 0
    %s368 = sadd.s32 %s367, 1
    %s369 = scalar_select %p366, %s367, %s368
    %p372 = pneg %p366
    %p373 = scmp.eq.s32.totalorder %s27, 3
    %p374 = por %p372, %p373
    %p375 = scmp.ne.s32.totalorder %s367, %s370
    %p376 = scmp.eq.s32.totalorder %s27, 0
    %p377 = por %p375, %p376
    %p378 = scmp.ne.s32.totalorder %s367, %s370
    %p379 = scmp.eq.s32.totalorder %s32, 3
    %p380 = por %p378, %p379
    %p381 = scmp.ne.s32.totalorder %s370, %s371
    %p382 = scmp.eq.s32.totalorder %s32, 0
    %p383 = por %p381, %p382
    %p384 = scmp.ne.s32.totalorder %s370, %s371
    %p385 = scmp.eq.s32.totalorder %s33, 3
    %p386 = por %p384, %p385
    %p388 = scmp.ne.s32.totalorder %s371, %s387
    %p389 = scmp.eq.s32.totalorder %s33, 0
    %p390 = por %p388, %p389
    %s391 = ssub.s32 %s35, %s42
    %p392 = scmp.eq.s32.totalorder %s391, 0
    %s394 = sadd.s32 %s393, 1
    %s395 = scalar_select %p392, %s393, %s394
    %p398 = pneg %p392
    %p399 = scmp.eq.s32.totalorder %s27, 3
    %p400 = por %p398, %p399
    %p401 = scmp.ne.s32.totalorder %s393, %s396
    %p402 = scmp.eq.s32.totalorder %s27, 0
    %p403 = por %p401, %p402
    %p404 = scmp.ne.s32.totalorder %s393, %s396
    %p405 = scmp.eq.s32.totalorder %s32, 3
    %p406 = por %p404, %p405
    %p407 = scmp.ne.s32.totalorder %s396, %s397
    %p408 = scmp.eq.s32.totalorder %s32, 0
    %p409 = por %p407, %p408
    %p410 = scmp.ne.s32.totalorder %s396, %s397
    %p411 = scmp.eq.s32.totalorder %s33, 3
    %p412 = por %p410, %p411
    %p414 = scmp.ne.s32.totalorder %s397, %s413
    %p415 = scmp.eq.s32.totalorder %s33, 0
    %p416 = por %p414, %p415
    %s417 = ssub.s32 %s35, %s42
    %p418 = scmp.eq.s32.totalorder %s417, 0
    %s420 = sadd.s32 %s419, 1
    %s421 = scalar_select %p418, %s419, %s420
    %p424 = pneg %p418
    %p425 = scmp.eq.s32.totalorder %s27, 3
    %p426 = por %p424, %p425
    %p427 = scmp.ne.s32.totalorder %s419, %s422
    %p428 = scmp.eq.s32.totalorder %s27, 0
    %p429 = por %p427, %p428
    %p430 = scmp.ne.s32.totalorder %s419, %s422
    %p431 = scmp.eq.s32.totalorder %s32, 3
    %p432 = por %p430, %p431
    %p433 = scmp.ne.s32.totalorder %s422, %s423
    %p434 = scmp.eq.s32.totalorder %s32, 0
    %p435 = por %p433, %p434
    %p436 = scmp.ne.s32.totalorder %s422, %s423
    %p437 = scmp.eq.s32.totalorder %s33, 3
    %p438 = por %p436, %p437
    %p440 = scmp.ne.s32.totalorder %s423, %s439
    %p441 = scmp.eq.s32.totalorder %s33, 0
    %p442 = por %p440, %p441
    %s443 = ssub.s32 %s35, %s42
    %p444 = scmp.eq.s32.totalorder %s443, 0
    %s446 = sadd.s32 %s445, 1
    %s447 = scalar_select %p444, %s445, %s446
    %p450 = pneg %p444
    %p451 = scmp.eq.s32.totalorder %s27, 3
    %p452 = por %p450, %p451
    %p453 = scmp.ne.s32.totalorder %s445, %s448
    %p454 = scmp.eq.s32.totalorder %s27, 0
    %p455 = por %p453, %p454
    %p456 = scmp.ne.s32.totalorder %s445, %s448
    %p457 = scmp.eq.s32.totalorder %s32, 3
    %p458 = por %p456, %p457
    %p459 = scmp.ne.s32.totalorder %s448, %s449
    %p460 = scmp.eq.s32.totalorder %s32, 0
    %p461 = por %p459, %p460
    %p462 = scmp.ne.s32.totalorder %s448, %s449
    %p463 = scmp.eq.s32.totalorder %s33, 3
    %p464 = por %p462, %p463
    %p466 = scmp.ne.s32.totalorder %s449, %s465
    %p467 = scmp.eq.s32.totalorder %s33, 0
    %p468 = por %p466, %p467
    %s469 = ssub.s32 %s35, %s42
    %p470 = scmp.eq.s32.totalorder %s469, 0
    %s472 = sadd.s32 %s471, 1
    %s473 = scalar_select %p470, %s471, %s472
    %p476 = pneg %p470
    %p477 = scmp.eq.s32.totalorder %s27, 3
    %p478 = por %p476, %p477
    %p479 = scmp.ne.s32.totalorder %s471, %s474
    %p480 = scmp.eq.s32.totalorder %s27, 0
    %p481 = por %p479, %p480
    %p482 = scmp.ne.s32.totalorder %s471, %s474
    %p483 = scmp.eq.s32.totalorder %s32, 3
    %p484 = por %p482, %p483
    %p485 = scmp.ne.s32.totalorder %s474, %s475
    %p486 = scmp.eq.s32.totalorder %s32, 0
    %p487 = por %p485, %p486
    %p488 = scmp.ne.s32.totalorder %s474, %s475
    %p489 = scmp.eq.s32.totalorder %s33, 3
    %p490 = por %p488, %p489
    %p492 = scmp.ne.s32.totalorder %s475, %s491
    %p493 = scmp.eq.s32.totalorder %s33, 0
    %p494 = por %p492, %p493
    %s495 = ssub.s32 %s35, %s42
    %p496 = scmp.eq.s32.totalorder %s495, 0
    %s498 = sadd.s32 %s497, 1
    %s499 = scalar_select %p496, %s497, %s498
    %p502 = pneg %p496
    %p503 = scmp.eq.s32.totalorder %s27, 3
    %p504 = por %p502, %p503
    %p505 = scmp.ne.s32.totalorder %s497, %s500
    %p506 = scmp.eq.s32.totalorder %s27, 0
    %p507 = por %p505, %p506
    %p508 = scmp.ne.s32.totalorder %s497, %s500
    %p509 = scmp.eq.s32.totalorder %s32, 3
    %p510 = por %p508, %p509
    %p511 = scmp.ne.s32.totalorder %s500, %s501
    %p512 = scmp.eq.s32.totalorder %s32, 0
    %p513 = por %p511, %p512
    %p514 = scmp.ne.s32.totalorder %s500, %s501
    %p515 = scmp.eq.s32.totalorder %s33, 3
    %p516 = por %p514, %p515
    %p518 = scmp.ne.s32.totalorder %s501, %s517
    %p519 = scmp.eq.s32.totalorder %s33, 0
    %p520 = por %p518, %p519
    %s521 = ssub.s32 %s35, %s42
    %p522 = scmp.eq.s32.totalorder %s521, 0
    %s524 = sadd.s32 %s523, 1
    %s525 = scalar_select %p522, %s523, %s524
    %p528 = pneg %p522
    %p529 = scmp.eq.s32.totalorder %s27, 3
    %p530 = por %p528, %p529
    %p531 = scmp.ne.s32.totalorder %s523, %s526
    %p532 = scmp.eq.s32.totalorder %s27, 0
    %p533 = por %p531, %p532
    %p534 = scmp.ne.s32.totalorder %s523, %s526
    %p535 = scmp.eq.s32.totalorder %s32, 3
    %p536 = por %p534, %p535
    %p537 = scmp.ne.s32.totalorder %s526, %s527
    %p538 = scmp.eq.s32.totalorder %s32, 0
    %p539 = por %p537, %p538
    %p540 = scmp.ne.s32.totalorder %s526, %s527
    %p541 = scmp.eq.s32.totalorder %s33, 3
    %p542 = por %p540, %p541
    %p544 = scmp.ne.s32.totalorder %s527, %s543
    %p545 = scmp.eq.s32.totalorder %s33, 0
    %p546 = por %p544, %p545
    %s547 = ssub.s32 %s35, %s42
    %p548 = scmp.eq.s32.totalorder %s547, 0
    %s550 = sadd.s32 %s549, 1
    %s551 = scalar_select %p548, %s549, %s550
    %p554 = pneg %p548
    %p555 = scmp.eq.s32.totalorder %s27, 3
    %p556 = por %p554, %p555
    %p557 = scmp.ne.s32.totalorder %s549, %s552
    %p558 = scmp.eq.s32.totalorder %s27, 0
    %p559 = por %p557, %p558
    %p560 = scmp.ne.s32.totalorder %s549, %s552
    %p561 = scmp.eq.s32.totalorder %s32, 3
    %p562 = por %p560, %p561
    %p563 = scmp.ne.s32.totalorder %s552, %s553
    %p564 = scmp.eq.s32.totalorder %s32, 0
    %p565 = por %p563, %p564
    %p566 = scmp.ne.s32.totalorder %s552, %s553
    %p567 = scmp.eq.s32.totalorder %s33, 3
    %p568 = por %p566, %p567
    %p570 = scmp.ne.s32.totalorder %s553, %s569
    %p571 = scmp.eq.s32.totalorder %s33, 0
    %p572 = por %p570, %p571
    %s573 = ssub.s32 %s34, %s46
    %p574 = scmp.eq.s32.totalorder %s573, 0
    %s576 = sadd.s32 %s575, 1
    %s577 = scalar_select %p574, %s575, %s576
    %p580 = pneg %p574
    %p581 = scmp.eq.s32.totalorder %s27, 3
    %p582 = por %p580, %p581
    %p583 = scmp.ne.s32.totalorder %s575, %s578
    %p584 = scmp.eq.s32.totalorder %s27, 0
    %p585 = por %p583, %p584
    %p586 = scmp.ne.s32.totalorder %s575, %s578
    %p587 = scmp.eq.s32.totalorder %s32, 3
    %p588 = por %p586, %p587
    %p589 = scmp.ne.s32.totalorder %s578, %s579
    %p590 = scmp.eq.s32.totalorder %s32, 0
    %p591 = por %p589, %p590
    %p592 = scmp.ne.s32.totalorder %s578, %s579
    %p593 = scmp.eq.s32.totalorder %s33, 3
    %p594 = por %p592, %p593
    %p596 = scmp.ne.s32.totalorder %s579, %s595
    %p597 = scmp.eq.s32.totalorder %s33, 0
    %p598 = por %p596, %p597
    %p599 = scmp.le.s32.totalorder 1, %s27
    %p600 = scmp.lt.s32.totalorder %s27, 5
    %p601 = pnand %p599, %p600
    %p602 = pneg %p601
    // Predicated region
    $region9: #{_lambda_.1} parent=5 // pred_check
      _
    $region10: #{_lambda_.1} parent=5 // pred_check_branch
      %604 = sbr.rel (%p601) target = $region12
    $region11: #{_lambda_.1} parent=5 // pred_region
      %s605 = ssub.s32 %s27, 1
      // Predicated region
      $region13: #{_lambda_.1} parent=11 // pred_check
        %p606 = pneg %p86
      $region14: #{_lambda_.1} parent=11 // pred_check_branch
        %608 = sbr.rel (%p606) target = $region16
      $region15: #{_lambda_.1} parent=11 // pred_region
        _
      $region16: #{_lambda_.1} parent=11 // pred_fallthru
        _
      // Predicated region
      $region17: #{_lambda_.1} parent=11 // pred_check
        %p609 = pneg %p107
      $region18: #{_lambda_.1} parent=11 // pred_check_branch
        %611 = sbr.rel (%p609) target = $region20
      $region19: #{_lambda_.1} parent=11 // pred_region
        _
      $region20: #{_lambda_.1} parent=11 // pred_fallthru
        _
      // Predicated region
      $region21: #{_lambda_.1} parent=11 // pred_check
        %p612 = pneg %p128
      $region22: #{_lambda_.1} parent=11 // pred_check_branch
        %614 = sbr.rel (%p612) target = $region24
      $region23: #{_lambda_.1} parent=11 // pred_region
        _
      $region24: #{_lambda_.1} parent=11 // pred_fallthru
        _
      // Predicated region
      $region25: #{_lambda_.1} parent=11 // pred_check
        %p615 = pneg %p149
      $region26: #{_lambda_.1} parent=11 // pred_check_branch
        %617 = sbr.rel (%p615) target = $region28
      $region27: #{_lambda_.1} parent=11 // pred_region
        _
      $region28: #{_lambda_.1} parent=11 // pred_fallthru
        _
    $region12: #{_lambda_.1} parent=5 // pred_fallthru
      _
    %p618 = scmp.lt.s32.totalorder %s27, 4
    // Predicated region
    $region29: #{_lambda_.1} parent=5 // pred_check
      %p619 = pneg %p618
    $region30: #{_lambda_.1} parent=5 // pred_check_branch
      %621 = sbr.rel (%p619) target = $region32
    $region31: #{_lambda_.1} parent=5 // pred_region
      // Predicated region
      $region33: #{_lambda_.1} parent=31 // pred_check
        %p622 = pneg %p59
      $region34: #{_lambda_.1} parent=31 // pred_check_branch
        %624 = sbr.rel (%p622) target = $region36
      $region35: #{_lambda_.1} parent=31 // pred_region
        %p625 = scmp.lt.s32.totalorder %s34, 1
        %s626 = scalar_select %p625, %s34, 1
        %s627 = smul.addr %s626, 2
        %s628 = smul.addr %s627, 4
        %s629 = scalar_lea.vmem %s0, %s628
      $region36: #{_lambda_.1} parent=31 // pred_fallthru
        _
      // Predicated region
      $region37: #{_lambda_.1} parent=31 // pred_check
        %p630 = pneg %p169
      $region38: #{_lambda_.1} parent=31 // pred_check_branch
        %632 = sbr.rel (%p630) target = $region40
      $region39: #{_lambda_.1} parent=31 // pred_region
        %p633 = scmp.lt.s32.totalorder %s35, 1
        %s634 = scalar_select %p633, %s35, 1
        %s635 = scalar_lea.vmem %s5, %s634
      $region40: #{_lambda_.1} parent=31 // pred_fallthru
        _
      // Predicated region
      $region41: #{_lambda_.1} parent=31 // pred_check
        %p636 = pneg %p195
      $region42: #{_lambda_.1} parent=31 // pred_check_branch
        %638 = sbr.rel (%p636) target = $region44
      $region43: #{_lambda_.1} parent=31 // pred_region
        %p639 = scmp.lt.s32.totalorder %s35, 1
        %s640 = scalar_select %p639, %s35, 1
        %s641 = scalar_lea.vmem %s6, %s640
      $region44: #{_lambda_.1} parent=31 // pred_fallthru
        _
      // Predicated region
      $region45: #{_lambda_.1} parent=31 // pred_check
        %p642 = pneg %p221
      $region46: #{_lambda_.1} parent=31 // pred_check_branch
        %644 = sbr.rel (%p642) target = $region48
      $region47: #{_lambda_.1} parent=31 // pred_region
        %p645 = scmp.lt.s32.totalorder %s35, 1
        %s646 = scalar_select %p645, %s35, 1
        %s647 = smul.addr %s646, 4
        %s648 = smul.addr %s647, 4
        %s649 = scalar_lea.vmem %s7, %s648
      $region48: #{_lambda_.1} parent=31 // pred_fallthru
        _
      // Predicated region
      $region49: #{_lambda_.1} parent=31 // pred_check
        %p650 = pneg %p247
      $region50: #{_lambda_.1} parent=31 // pred_check_branch
        %652 = sbr.rel (%p650) target = $region52
      $region51: #{_lambda_.1} parent=31 // pred_region
        %p653 = scmp.lt.s32.totalorder %s35, 1
        %s654 = scalar_select %p653, %s35, 1
        %s655 = scalar_lea.vmem %s8, %s654
      $region52: #{_lambda_.1} parent=31 // pred_fallthru
        _
      // Predicated region
      $region53: #{_lambda_.1} parent=31 // pred_check
        %p656 = pneg %p273
      $region54: #{_lambda_.1} parent=31 // pred_check_branch
        %658 = sbr.rel (%p656) target = $region56
      $region55: #{_lambda_.1} parent=31 // pred_region
        %p659 = scmp.lt.s32.totalorder %s35, 1
        %s660 = scalar_select %p659, %s35, 1
        %s661 = smul.addr %s660, 4
        %s662 = smul.addr %s661, 4
        %s663 = scalar_lea.vmem %s9, %s662
      $region56: #{_lambda_.1} parent=31 // pred_fallthru
        _
      // Predicated region
      $region57: #{_lambda_.1} parent=31 // pred_check
        %p664 = pneg %p299
      $region58: #{_lambda_.1} parent=31 // pred_check_branch
        %666 = sbr.rel (%p664) target = $region60
      $region59: #{_lambda_.1} parent=31 // pred_region
        %p667 = scmp.lt.s32.totalorder %s35, 1
        %s668 = scalar_select %p667, %s35, 1
        %s669 = scalar_lea.vmem %s10, %s668
      $region60: #{_lambda_.1} parent=31 // pred_fallthru
        _
      // Predicated region
      $region61: #{_lambda_.1} parent=31 // pred_check
        %p670 = pneg %p325
      $region62: #{_lambda_.1} parent=31 // pred_check_branch
        %672 = sbr.rel (%p670) target = $region64
      $region63: #{_lambda_.1} parent=31 // pred_region
        %p673 = scmp.lt.s32.totalorder %s35, 1
        %s674 = scalar_select %p673, %s35, 1
        %s675 = smul.addr %s674, 4
        %s676 = smul.addr %s675, 4
        %s677 = scalar_lea.vmem %s11, %s676
      $region64: #{_lambda_.1} parent=31 // pred_fallthru
        _
      // Predicated region
      $region65: #{_lambda_.1} parent=31 // pred_check
        %p678 = pneg %p351
      $region66: #{_lambda_.1} parent=31 // pred_check_branch
        %680 = sbr.rel (%p678) target = $region68
      $region67: #{_lambda_.1} parent=31 // pred_region
        %p681 = scmp.lt.s32.totalorder %s35, 1
        %s682 = scalar_select %p681, %s35, 1
        %s683 = scalar_lea.vmem %s12, %s682
      $region68: #{_lambda_.1} parent=31 // pred_fallthru
        _
      // Predicated region
      $region69: #{_lambda_.1} parent=31 // pred_check
        %p684 = pneg %p377
      $region70: #{_lambda_.1} parent=31 // pred_check_branch
        %686 = sbr.rel (%p684) target = $region72
      $region71: #{_lambda_.1} parent=31 // pred_region
        %p687 = scmp.lt.s32.totalorder %s35, 1
        %s688 = scalar_select %p687, %s35, 1
        %s689 = smul.addr %s688, 4
        %s690 = smul.addr %s689, 4
        %s691 = scalar_lea.vmem %s13, %s690
      $region72: #{_lambda_.1} parent=31 // pred_fallthru
        _
      // Predicated region
      $region73: #{_lambda_.1} parent=31 // pred_check
        %p692 = pneg %p403
      $region74: #{_lambda_.1} parent=31 // pred_check_branch
        %694 = sbr.rel (%p692) target = $region76
      $region75: #{_lambda_.1} parent=31 // pred_region
        %p695 = scmp.lt.s32.totalorder %s35, 1
        %s696 = scalar_select %p695, %s35, 1
        %s697 = scalar_lea.vmem %s14, %s696
      $region76: #{_lambda_.1} parent=31 // pred_fallthru
        _
      // Predicated region
      $region77: #{_lambda_.1} parent=31 // pred_check
        %p698 = pneg %p429
      $region78: #{_lambda_.1} parent=31 // pred_check_branch
        %700 = sbr.rel (%p698) target = $region80
      $region79: #{_lambda_.1} parent=31 // pred_region
        %p701 = scmp.lt.s32.totalorder %s35, 1
        %s702 = scalar_select %p701, %s35, 1
        %s703 = scalar_lea.vmem %s15, %s702
      $region80: #{_lambda_.1} parent=31 // pred_fallthru
        _
      // Predicated region
      $region81: #{_lambda_.1} parent=31 // pred_check
        %p704 = pneg %p455
      $region82: #{_lambda_.1} parent=31 // pred_check_branch
        %706 = sbr.rel (%p704) target = $region84
      $region83: #{_lambda_.1} parent=31 // pred_region
        %p707 = scmp.lt.s32.totalorder %s35, 1
        %s708 = scalar_select %p707, %s35, 1
        %s709 = scalar_lea.vmem %s16, %s708
      $region84: #{_lambda_.1} parent=31 // pred_fallthru
        _
      // Predicated region
      $region85: #{_lambda_.1} parent=31 // pred_check
        %p710 = pneg %p481
      $region86: #{_lambda_.1} parent=31 // pred_check_branch
        %712 = sbr.rel (%p710) target = $region88
      $region87: #{_lambda_.1} parent=31 // pred_region
        %p713 = scmp.lt.s32.totalorder %s35, 1
        %s714 = scalar_select %p713, %s35, 1
        %s715 = smul.addr %s714, 4
        %s716 = smul.addr %s715, 4
        %s717 = scalar_lea.vmem %s17, %s716
      $region88: #{_lambda_.1} parent=31 // pred_fallthru
        _
      // Predicated region
      $region89: #{_lambda_.1} parent=31 // pred_check
        %p718 = pneg %p507
      $region90: #{_lambda_.1} parent=31 // pred_check_branch
        %720 = sbr.rel (%p718) target = $region92
      $region91: #{_lambda_.1} parent=31 // pred_region
        %p721 = scmp.lt.s32.totalorder %s35, 1
        %s722 = scalar_select %p721, %s35, 1
        %s723 = scalar_lea.vmem %s18, %s722
      $region92: #{_lambda_.1} parent=31 // pred_fallthru
        _
      // Predicated region
      $region93: #{_lambda_.1} parent=31 // pred_check
        %p724 = pneg %p533
      $region94: #{_lambda_.1} parent=31 // pred_check_branch
        %726 = sbr.rel (%p724) target = $region96
      $region95: #{_lambda_.1} parent=31 // pred_region
        %p727 = scmp.lt.s32.totalorder %s35, 1
        %s728 = scalar_select %p727, %s35, 1
        %s729 = smul.addr %s728, 8
        %s730 = smul.addr %s729, 4
        %s731 = scalar_lea.vmem %s19, %s730
      $region96: #{_lambda_.1} parent=31 // pred_fallthru
        _
      // Predicated region
      $region97: #{_lambda_.1} parent=31 // pred_check
        %p732 = pneg %p559
      $region98: #{_lambda_.1} parent=31 // pred_check_branch
        %734 = sbr.rel (%p732) target = $region100
      $region99: #{_lambda_.1} parent=31 // pred_region
        %p735 = scmp.lt.s32.totalorder %s35, 1
        %s736 = scalar_select %p735, %s35, 1
        %s737 = scalar_lea.vmem %s20, %s736
      $region100: #{_lambda_.1} parent=31 // pred_fallthru
        _
    $region32: #{_lambda_.1} parent=5 // pred_fallthru
      _
    %p738 = scmp.le.s32.totalorder 1, %s27
    %p739 = scmp.lt.s32.totalorder %s27, 5
    %p740 = pnand %p738, %p739
    %p741 = pneg %p740
    // Predicated region
    $region101: #{_lambda_.1} parent=5 // pred_check
      _
    $region102: #{_lambda_.1} parent=5 // pred_check_branch
      %743 = sbr.rel (%p740) target = $region104
    $region103: #{_lambda_.1} parent=5 // pred_region
      %s744 = ssub.s32 %s27, 1
      %p745 = scmp.lt.s32.totalorder %s36, 1
      %s746 = scalar_select %p745, %s36, 1
      %s747 = smul.addr %s746, 2
      %s748 = smul.addr %s747, 4
      %s749 = scalar_lea.vmem %s0, %s748
      %p750 = pneg %p65
      %p751 = pneg %p62
      %p752 = pneg %p86
      %p753 = pneg %p83
      %p754 = pneg %p107
      %p755 = pneg %p104
      %p756 = pneg %p128
      %p757 = pneg %p125
      %p758 = pneg %p149
      %p759 = pneg %p146
      %p760 = scmp.lt.s32.totalorder %s37, 1
      %s761 = scalar_select %p760, %s37, 1
      %s762 = scalar_lea.vmem %s5, %s761
      %p763 = pneg %p175
      %p764 = pneg %p172
      %p765 = scmp.lt.s32.totalorder %s37, 1
      %s766 = scalar_select %p765, %s37, 1
      %s767 = scalar_lea.vmem %s6, %s766
      %p768 = pneg %p201
      %p769 = pneg %p198
      %p770 = scmp.lt.s32.totalorder %s37, 1
      %s771 = scalar_select %p770, %s37, 1
      %s772 = smul.addr %s771, 4
      %s773 = smul.addr %s772, 4
      %s774 = scalar_lea.vmem %s7, %s773
      %p775 = pneg %p227
      %p776 = pneg %p224
      %p777 = scmp.lt.s32.totalorder %s37, 1
      %s778 = scalar_select %p777, %s37, 1
      %s779 = scalar_lea.vmem %s8, %s778
      %p780 = pneg %p253
      %p781 = pneg %p250
      %p782 = scmp.lt.s32.totalorder %s37, 1
      %s783 = scalar_select %p782, %s37, 1
      %s784 = smul.addr %s783, 4
      %s785 = smul.addr %s784, 4
      %s786 = scalar_lea.vmem %s9, %s785
      %p787 = pneg %p279
      %p788 = pneg %p276
      %p789 = scmp.lt.s32.totalorder %s37, 1
      %s790 = scalar_select %p789, %s37, 1
      %s791 = scalar_lea.vmem %s10, %s790
      %p792 = pneg %p305
      %p793 = pneg %p302
      %p794 = scmp.lt.s32.totalorder %s37, 1
      %s795 = scalar_select %p794, %s37, 1
      %s796 = smul.addr %s795, 4
      %s797 = smul.addr %s796, 4
      %s798 = scalar_lea.vmem %s11, %s797
      %p799 = pneg %p331
      %p800 = pneg %p328
      %p801 = scmp.lt.s32.totalorder %s37, 1
      %s802 = scalar_select %p801, %s37, 1
      %s803 = scalar_lea.vmem %s12, %s802
      %p804 = pneg %p357
      %p805 = pneg %p354
      %p806 = scmp.lt.s32.totalorder %s37, 1
      %s807 = scalar_select %p806, %s37, 1
      %s808 = smul.addr %s807, 4
      %s809 = smul.addr %s808, 4
      %s810 = scalar_lea.vmem %s13, %s809
      %p811 = pneg %p383
      %p812 = pneg %p380
      %p813 = scmp.lt.s32.totalorder %s37, 1
      %s814 = scalar_select %p813, %s37, 1
      %s815 = scalar_lea.vmem %s14, %s814
      %p816 = pneg %p409
      %p817 = pneg %p406
      %p818 = scmp.lt.s32.totalorder %s37, 1
      %s819 = scalar_select %p818, %s37, 1
      %s820 = scalar_lea.vmem %s15, %s819
      %p821 = pneg %p435
      %p822 = pneg %p432
      %p823 = scmp.lt.s32.totalorder %s37, 1
      %s824 = scalar_select %p823, %s37, 1
      %s825 = scalar_lea.vmem %s16, %s824
      %p826 = pneg %p461
      %p827 = pneg %p458
      %p828 = scmp.lt.s32.totalorder %s37, 1
      %s829 = scalar_select %p828, %s37, 1
      %s830 = smul.addr %s829, 4
      %s831 = smul.addr %s830, 4
      %s832 = scalar_lea.vmem %s17, %s831
      %p833 = pneg %p487
      %p834 = pneg %p484
      %p835 = scmp.lt.s32.totalorder %s37, 1
      %s836 = scalar_select %p835, %s37, 1
      %s837 = scalar_lea.vmem %s18, %s836
      %p838 = pneg %p513
      %p839 = pneg %p510
      %p840 = scmp.lt.s32.totalorder %s37, 1
      %s841 = scalar_select %p840, %s37, 1
      %s842 = smul.addr %s841, 8
      %s843 = smul.addr %s842, 4
      %s844 = scalar_lea.vmem %s19, %s843
      %p845 = pneg %p539
      %p846 = pneg %p536
      %p847 = scmp.lt.s32.totalorder %s37, 1
      %s848 = scalar_select %p847, %s37, 1
      %s849 = scalar_lea.vmem %s20, %s848
      %p850 = pneg %p565
      %p851 = pneg %p562
      %p852 = pneg %p591
      %p853 = pneg %p588
      %p854 = scmp.lt.s32.totalorder %s36, 1
      %s855 = scalar_select %p854, %s36, 1
      %s856 = smul.addr %s855, 8
      %s857 = scalar_lea.vmem %s21, %s856
      %p858 = scmp.lt.s32.totalorder %s36, 1
      %s859 = scalar_select %p858, %s36, 1
      %s860 = smul.addr %s859, 2
      %s861 = smul.addr %s860, 4
      %s862 = scalar_lea.vmem %s0, %s861
      %p863 = scmp.lt.s32.totalorder %s37, 1
      %s864 = scalar_select %p863, %s37, 1
      %s865 = scalar_lea.vmem %s5, %s864
      %p866 = scmp.lt.s32.totalorder %s37, 1
      %s867 = scalar_select %p866, %s37, 1
      %s868 = scalar_lea.vmem %s6, %s867
      %p869 = scmp.lt.s32.totalorder %s37, 1
      %s870 = scalar_select %p869, %s37, 1
      %s871 = smul.addr %s870, 4
      %s872 = smul.addr %s871, 4
      %s873 = scalar_lea.vmem %s7, %s872
      %p874 = scmp.lt.s32.totalorder %s37, 1
      %s875 = scalar_select %p874, %s37, 1
      %s876 = scalar_lea.vmem %s8, %s875
      %p877 = scmp.lt.s32.totalorder %s37, 1
      %s878 = scalar_select %p877, %s37, 1
      %s879 = smul.addr %s878, 4
      %s880 = smul.addr %s879, 4
      %s881 = scalar_lea.vmem %s9, %s880
      %p882 = scmp.lt.s32.totalorder %s37, 1
      %s883 = scalar_select %p882, %s37, 1
      %s884 = scalar_lea.vmem %s10, %s883
      %p885 = scmp.lt.s32.totalorder %s37, 1
      %s886 = scalar_select %p885, %s37, 1
      %s887 = smul.addr %s886, 4
      %s888 = smul.addr %s887, 4
      %s889 = scalar_lea.vmem %s11, %s888
      %p890 = scmp.lt.s32.totalorder %s37, 1
      %s891 = scalar_select %p890, %s37, 1
      %s892 = scalar_lea.vmem %s12, %s891
      %p893 = scmp.lt.s32.totalorder %s37, 1
      %s894 = scalar_select %p893, %s37, 1
      %s895 = smul.addr %s894, 4
      %s896 = smul.addr %s895, 4
      %s897 = scalar_lea.vmem %s13, %s896
      %p898 = scmp.lt.s32.totalorder %s37, 1
      %s899 = scalar_select %p898, %s37, 1
      %s900 = scalar_lea.vmem %s14, %s899
      %p901 = scmp.lt.s32.totalorder %s37, 1
      %s902 = scalar_select %p901, %s37, 1
      %s903 = scalar_lea.vmem %s15, %s902
      %p904 = scmp.lt.s32.totalorder %s37, 1
      %s905 = scalar_select %p904, %s37, 1
      %s906 = scalar_lea.vmem %s16, %s905
      %p907 = scmp.lt.s32.totalorder %s37, 1
      %s908 = scalar_select %p907, %s37, 1
      %s909 = smul.addr %s908, 4
      %s910 = smul.addr %s909, 4
      %s911 = scalar_lea.vmem %s17, %s910
      %p912 = scmp.lt.s32.totalorder %s37, 1
      %s913 = scalar_select %p912, %s37, 1
      %s914 = scalar_lea.vmem %s18, %s913
      %p915 = scmp.lt.s32.totalorder %s37, 1
      %s916 = scalar_select %p915, %s37, 1
      %s917 = smul.addr %s916, 8
      %s918 = smul.addr %s917, 4
      %s919 = scalar_lea.vmem %s19, %s918
      %p920 = scmp.lt.s32.totalorder %s37, 1
      %s921 = scalar_select %p920, %s37, 1
      %s922 = scalar_lea.vmem %s20, %s921
      %p923 = scmp.lt.s32.totalorder %s36, 1
      %s924 = scalar_select %p923, %s36, 1
      %s925 = smul.addr %s924, 8
      %s926 = scalar_lea.vmem %s21, %s925
      %p928 = scmp.eq.s32.totalorder %s37, 0
      // Predicated region
      $region105: #{_lambda_.1} parent=103 // pred_check
        %p929 = pneg %p928
      $region106: #{_lambda_.1} parent=103 // pred_check_branch
        %931 = sbr.rel (%p929) target = $region108
      $region107: #{_lambda_.1} parent=103 // pred_region
        %v932 = vld [vmem:[%s862] sm:$0x77]
        %v933 = vld [vmem:[%s1] sm:$0xf]
        %v934 = vld [vmem:[%s1 + $0x4] sm:$0xf]
        %v935 = vld [vmem:[%s1 + $0x8] sm:$0xf]
        %v936 = vld [vmem:[%s1 + $0xc] sm:$0xf]
        %v937 = vld [vmem:[%s1 + $0x10] sm:$0xf]
        %v938 = vld [vmem:[%s1 + $0x14] sm:$0xf]
        %v939 = vld [vmem:[%s1 + $0x18] sm:$0xf]
        %v940 = vld [vmem:[%s1 + $0x1c] sm:$0xf]
        %v941 = vld [vmem:[%s1 + $0x20] sm:$0xf]
        %v942 = vld [vmem:[%s1 + $0x24] sm:$0xf]
        %v943 = vld [vmem:[%s1 + $0x28] sm:$0xf]
        %v944 = vld [vmem:[%s1 + $0x2c] sm:$0xf]
        %v945 = vld [vmem:[%s1 + $0x30] sm:$0xf]
        %v946 = vld [vmem:[%s1 + $0x34] sm:$0xf]
        %v947 = vld [vmem:[%s1 + $0x38] sm:$0xf]
        %v948 = vld [vmem:[%s1 + $0x3c] sm:$0xf]
        %v949 = vld [vmem:[%s1 + $0x40] sm:$0xf]
        %v950 = vld [vmem:[%s1 + $0x44] sm:$0xf]
        %v951 = vld [vmem:[%s1 + $0x48] sm:$0xf]
        %v952 = vld [vmem:[%s1 + $0x4c] sm:$0xf]
        %v953 = vld [vmem:[%s1 + $0x50] sm:$0xf]
        %v954 = vld [vmem:[%s1 + $0x54] sm:$0xf]
        %v955 = vld [vmem:[%s1 + $0x58] sm:$0xf]
        %v956 = vld [vmem:[%s1 + $0x5c] sm:$0xf]
        %v957 = vld [vmem:[%s2] sm:$0x1f]
        %v959 = vunpack.c.l.b16 %v932
        %v960 = vunpack.c.h.b16 %v932
        %v961 = vpack.c.b16 %v959, %v959
        %v962 = vpack.c.b16 %v960, %v960
        %v988 = vunpack.c.l.b16 %v933
        %v989 = vunpack.c.l.b16 %v934
        %v990 = vunpack.c.l.b16 %v935
        %v991 = vunpack.c.l.b16 %v936
        %v992 = vunpack.c.l.b16 %v937
        %v993 = vunpack.c.l.b16 %v938
        %v994 = vunpack.c.l.b16 %v939
        %v995 = vunpack.c.l.b16 %v940
        %v996 = vunpack.c.l.b16 %v941
        %v997 = vunpack.c.l.b16 %v942
        %v998 = vunpack.c.l.b16 %v943
        %v999 = vunpack.c.l.b16 %v944
        %v1000 = vunpack.c.l.b16 %v945
        %v1001 = vunpack.c.l.b16 %v946
        %v1002 = vunpack.c.l.b16 %v947
        %v1003 = vunpack.c.l.b16 %v948
        %v1004 = vunpack.c.l.b16 %v949
        %v1005 = vunpack.c.l.b16 %v950
        %v1006 = vunpack.c.l.b16 %v951
        %v1007 = vunpack.c.l.b16 %v952
        %v1008 = vunpack.c.l.b16 %v953
        %v1009 = vunpack.c.l.b16 %v954
        %v1010 = vunpack.c.l.b16 %v955
        %v1011 = vunpack.c.l.b16 %v956
        %v1012 = vpack.c.b16 %v989, %v988
        %v1013 = vpack.c.b16 %v991, %v990
        %v1014 = vpack.c.b16 %v993, %v992
        %v1015 = vpack.c.b16 %v995, %v994
        %v1016 = vpack.c.b16 %v997, %v996
        %v1017 = vpack.c.b16 %v999, %v998
        %v1018 = vpack.c.b16 %v1001, %v1000
        %v1019 = vpack.c.b16 %v1003, %v1002
        %v1020 = vpack.c.b16 %v1005, %v1004
        %v1021 = vpack.c.b16 %v1007, %v1006
        %v1022 = vpack.c.b16 %v1009, %v1008
        %v1023 = vpack.c.b16 %v1011, %v1010
        %vm1036 = vcmask 523264
        %v1038 = vsel %vm1036, %v962, 0
        %1040 = vmatprep.subr.bf16.mxu0 0
        %1041 = vmatpush1.bf16.msra.mxu0 %v1019
        %1042 = vmatprep.subr.bf16.mxu0 0
        %1043 = vmatpush1.bf16.msra.mxu0 %v1018
        %1044 = vmatprep.subr.bf16.mxu0 0
        %1045 = vmatpush1.bf16.msra.mxu0 %v1017
        %1046 = vmatprep.subr.bf16.mxu0 0
        %1047 = vmatpush1.bf16.msra.mxu0 %v1016
        %1048 = vmatprep.subr.bf16.mxu0 0
        %1049 = vmatpush1.bf16.msra.mxu0 %v1015
        %1050 = vmatprep.subr.bf16.mxu0 0
        %1051 = vmatpush1.bf16.msra.mxu0 %v1014
        %1052 = vmatprep.subr.bf16.mxu0 0
        %1053 = vmatpush1.bf16.msra.mxu0 %v1013
        %1054 = vmatprep.subr.bf16.mxu0 0
        %1055 = vmatpush1.bf16.msra.mxu0 %v1012
        %1056 = vmatprep.subr.bf16.mxu0 0
        %1057 = vmatpush2.bf16.msra.mxu0 0
        %1058 = vmatprep.subr.bf16.mxu0 0
        %1059 = vmatpush2.bf16.msra.mxu0 0
        %1060 = vmatprep.subr.bf16.mxu0 0
        %1061 = vmatpush2.bf16.msra.mxu0 0
        %1062 = vmatprep.subr.bf16.mxu0 0
        %1063 = vmatpush2.bf16.msra.mxu0 0
        %1064 = vmatprep.subr.bf16.mxu0 0
        %1065 = vmatpush2.bf16.msra.mxu0 %v1023
        %1066 = vmatprep.subr.bf16.mxu0 0
        %1067 = vmatpush2.bf16.msra.mxu0 %v1022
        %1068 = vmatprep.subr.bf16.mxu0 0
        %1069 = vmatpush2.bf16.msra.mxu0 %v1021
        %1070 = vmatprep.subr.bf16.mxu0 0
        %1071 = vmatpush2.bf16.msra.mxu0 %v1020
        %1072 = vmatprep.mubr.bf16.mxu0 %v1038
        %1073 = vmatmul.mubr.bf16.gmra.mxu0 %v961
        %v1074 = vpop.f32.mrf.mxu0
        %v1075 = vadd.f32 %v957, %v1074
        %v1076 = vpop.f32.mrf.mxu0
        %v1077 = vpop.f32.mrf.mxu0
        %v1078 = vpop.f32.mrf.mxu0
        %1079 = vdwg.mxu0
        %vm1080 = vcmask 258048
        %v1081 = vsel %vm1080, %v1075, 0.0
        %1082 = vadd.xlane.f32.xlu0 %v1081
        %v1083 = vpop.xlane.xlu0 %1082
        %v1084 = vrcp.pop 32.0
        %v1085 = vmul.f32 %v1083, %v1084
        %v1086 = vsub.f32 %v1075, %v1085
        %v1087 = vmul.f32 %v1086, %v1086
        %v1088 = vsel %vm1080, %v1087, 0.0
        %1089 = vadd.xlane.f32.xlu0 %v1088
        %v1090 = vpop.xlane.xlu0 %1089
        %v1091 = vmul.f32 %v1090, %v1084
        %v1092 = vadd.f32 %v1091, 1e-05
        %v1093 = vrsqrt.pop %v1092
        %v1094 = vmul.f32 %v1086, %v1093
        %v1095 = vld [vmem:[%s3] sm:$0x1]
        %v1097 = vlaneseq
        %v1098 = vshrl.u32 %v1097, 7
        %v1099 = vsub.s32 0, %v1098
        %v1100 = vrot.slane %v1095, %v1099
        %v1102 = vmul.f32 %v1094, %v1100
        %v1103 = vld [vmem:[%s4] sm:$0x1]
        %v1105 = vlaneseq
        %v1106 = vshrl.u32 %v1105, 7
        %v1107 = vsub.s32 0, %v1106
        %v1108 = vrot.slane %v1103, %v1107
        %v1110 = vadd.f32 %v1102, %v1108
        %1111 = vst.msk [vmem:[%s926] sm:$0x1f] %vm1080, %v1110
      $region108: #{_lambda_.1} parent=103 // pred_fallthru
        _
      %v1112 = vld [vmem:[%s926] sm:$0x1f]
      %vm1113 = vcmask 258048
      %v1114 = vsel %vm1113, %v1112, 0.0
      %1115 = vadd.xlane.f32.xlu0 %v1114
      %v1116 = vpop.xlane.xlu0 %1115
      %v1117 = vrcp.pop 32.0
      %v1118 = vmul.f32 %v1116, %v1117
      %v1119 = vsub.f32 %v1112, %v1118
      %v1120 = vmul.f32 %v1119, %v1119
      %v1121 = vsel %vm1113, %v1120, 0.0
      %1122 = vadd.xlane.f32.xlu0 %v1121
      %v1123 = vpop.xlane.xlu0 %1122
      %v1124 = vmul.f32 %v1123, %v1117
      %v1125 = vadd.f32 %v1124, 1e-05
      %v1126 = vrsqrt.pop %v1125
      %v1127 = vmul.f32 %v1119, %v1126
      %v1128 = vld [vmem:[%s865] sm:$0x1]
      %v1130 = vlaneseq
      %v1131 = vshrl.u32 %v1130, 7
      %v1132 = vsub.s32 0, %v1131
      %v1133 = vrot.slane %v1128, %v1132
      %v1135 = vmul.f32 %v1127, %v1133
      %v1136 = vld [vmem:[%s868] sm:$0x1]
      %v1138 = vlaneseq
      %v1139 = vshrl.u32 %v1138, 7
      %v1140 = vsub.s32 0, %v1139
      %v1141 = vrot.slane %v1136, %v1140
      %v1143 = vadd.f32 %v1135, %v1141
      %v1144 = vpack.c.bf16 %v1143, %v1143
      %v1145 = vld [vmem:[%s873] sm:$0xf]
      %v1146 = vld [vmem:[%s873 + $0x4] sm:$0xf]
      %v1147 = vld [vmem:[%s873 + $0x8] sm:$0xf]
      %v1148 = vld [vmem:[%s873 + $0xc] sm:$0xf]
      %v1149 = vld [vmem:[%s876] sm:$0x1]
      %v1151 = vlaneseq
      %v1152 = vshrl.u32 %v1151, 7
      %v1153 = vsub.s32 0, %v1152
      %v1154 = vrot.slane %v1149, %v1153
      %v1160 = vunpack.c.l.b16 %v1145
      %v1161 = vunpack.c.l.b16 %v1146
      %v1162 = vunpack.c.l.b16 %v1147
      %v1163 = vunpack.c.l.b16 %v1148
      %v1164 = vpack.c.b16 %v1161, %v1160
      %v1165 = vpack.c.b16 %v1163, %v1162
      %vm1168 = vcmask 261120
      %v1170 = vsel %vm1168, %v1144, 0
      %1172 = vmatprep.subr.bf16.mxu0 0
      %1173 = vmatpush1.bf16.msra.mxu0 0
      %1174 = vmatprep.subr.bf16.mxu0 0
      %1175 = vmatpush1.bf16.msra.mxu0 0
      %1176 = vmatprep.subr.bf16.mxu0 0
      %1177 = vmatpush1.bf16.msra.mxu0 0
      %1178 = vmatprep.subr.bf16.mxu0 0
      %1179 = vmatpush1.bf16.msra.mxu0 0
      %1180 = vmatprep.subr.bf16.mxu0 0
      %1181 = vmatpush1.bf16.msra.mxu0 0
      %1182 = vmatprep.subr.bf16.mxu0 0
      %1183 = vmatpush1.bf16.msra.mxu0 0
      %1184 = vmatprep.subr.bf16.mxu0 0
      %1185 = vmatpush1.bf16.msra.mxu0 %v1165
      %1186 = vmatprep.subr.bf16.mxu0 0
      %1187 = vmatpush1.bf16.msra.mxu0 %v1164
      %1188 = vmatprep.subr.bf16.mxu0 0
      %1189 = vmatpush2.bf16.msra.mxu0 0
      %1190 = vmatprep.subr.bf16.mxu0 0
      %1191 = vmatpush2.bf16.msra.mxu0 0
      %1192 = vmatprep.subr.bf16.mxu0 0
      %1193 = vmatpush2.bf16.msra.mxu0 0
      %1194 = vmatprep.subr.bf16.mxu0 0
      %1195 = vmatpush2.bf16.msra.mxu0 0
      %1196 = vmatprep.subr.bf16.mxu0 0
      %1197 = vmatpush2.bf16.msra.mxu0 0
      %1198 = vmatprep.subr.bf16.mxu0 0
      %1199 = vmatpush2.bf16.msra.mxu0 0
      %1200 = vmatprep.subr.bf16.mxu0 0
      %1201 = vmatpush2.bf16.msra.mxu0 0
      %1202 = vmatprep.subr.bf16.mxu0 0
      %1203 = vmatpush2.bf16.msra.mxu0 0
      %1204 = vmatprep.mubr.bf16.mxu0 0
      %1205 = vmatmul.mubr.bf16.gmra.mxu0 %v1170
      %v1206 = vpop.f32.mrf.mxu0
      %v1207 = vadd.f32 %v1154, %v1206
      %v1208 = vpop.f32.mrf.mxu0
      %v1209 = vpop.f32.mrf.mxu0
      %v1210 = vpop.f32.mrf.mxu0
      %1211 = vdwg.mxu0
      %v1212 = vld [vmem:[%s881] sm:$0xf]
      %v1213 = vld [vmem:[%s881 + $0x4] sm:$0xf]
      %v1214 = vld [vmem:[%s881 + $0x8] sm:$0xf]
      %v1215 = vld [vmem:[%s881 + $0xc] sm:$0xf]
      %v1216 = vld [vmem:[%s884] sm:$0x1]
      %v1218 = vlaneseq
      %v1219 = vshrl.u32 %v1218, 7
      %v1220 = vsub.s32 0, %v1219
      %v1221 = vrot.slane %v1216, %v1220
      %v1227 = vunpack.c.l.b16 %v1212
      %v1228 = vunpack.c.l.b16 %v1213
      %v1229 = vunpack.c.l.b16 %v1214
      %v1230 = vunpack.c.l.b16 %v1215
      %v1231 = vpack.c.b16 %v1228, %v1227
      %v1232 = vpack.c.b16 %v1230, %v1229
      %1235 = vmatprep.subr.bf16.mxu0 0
      %1236 = vmatpush1.bf16.msra.mxu0 0
      %1237 = vmatprep.subr.bf16.mxu0 0
      %1238 = vmatpush1.bf16.msra.mxu0 0
      %1239 = vmatprep.subr.bf16.mxu0 0
      %1240 = vmatpush1.bf16.msra.mxu0 0
      %1241 = vmatprep.subr.bf16.mxu0 0
      %1242 = vmatpush1.bf16.msra.mxu0 0
      %1243 = vmatprep.subr.bf16.mxu0 0
      %1244 = vmatpush1.bf16.msra.mxu0 0
      %1245 = vmatprep.subr.bf16.mxu0 0
      %1246 = vmatpush1.bf16.msra.mxu0 0
      %1247 = vmatprep.subr.bf16.mxu0 0
      %1248 = vmatpush1.bf16.msra.mxu0 %v1232
      %1249 = vmatprep.subr.bf16.mxu0 0
      %1250 = vmatpush1.bf16.msra.mxu0 %v1231
      %1251 = vmatprep.subr.bf16.mxu0 0
      %1252 = vmatpush2.bf16.msra.mxu0 0
      %1253 = vmatprep.subr.bf16.mxu0 0
      %1254 = vmatpush2.bf16.msra.mxu0 0
      %1255 = vmatprep.subr.bf16.mxu0 0
      %1256 = vmatpush2.bf16.msra.mxu0 0
      %1257 = vmatprep.subr.bf16.mxu0 0
      %1258 = vmatpush2.bf16.msra.mxu0 0
      %1259 = vmatprep.subr.bf16.mxu0 0
      %1260 = vmatpush2.bf16.msra.mxu0 0
      %1261 = vmatprep.subr.bf16.mxu0 0
      %1262 = vmatpush2.bf16.msra.mxu0 0
      %1263 = vmatprep.subr.bf16.mxu0 0
      %1264 = vmatpush2.bf16.msra.mxu0 0
      %1265 = vmatprep.subr.bf16.mxu0 0
      %1266 = vmatpush2.bf16.msra.mxu0 0
      %1267 = vmatprep.mubr.bf16.mxu0 0
      %1268 = vmatmul.mubr.bf16.gmra.mxu0 %v1170
      %v1269 = vpop.f32.mrf.mxu0
      %v1270 = vadd.f32 %v1221, %v1269
      %v1271 = vpop.f32.mrf.mxu0
      %v1272 = vpop.f32.mrf.mxu0
      %v1273 = vpop.f32.mrf.mxu0
      %1274 = vdwg.mxu0
      %v1275 = vld [vmem:[%s889] sm:$0xf]
      %v1276 = vld [vmem:[%s889 + $0x4] sm:$0xf]
      %v1277 = vld [vmem:[%s889 + $0x8] sm:$0xf]
      %v1278 = vld [vmem:[%s889 + $0xc] sm:$0xf]
      %v1279 = vld [vmem:[%s892] sm:$0x1]
      %v1281 = vlaneseq
      %v1282 = vshrl.u32 %v1281, 7
      %v1283 = vsub.s32 0, %v1282
      %v1284 = vrot.slane %v1279, %v1283
      %v1290 = vunpack.c.l.b16 %v1275
      %v1291 = vunpack.c.l.b16 %v1276
      %v1292 = vunpack.c.l.b16 %v1277
      %v1293 = vunpack.c.l.b16 %v1278
      %v1294 = vpack.c.b16 %v1291, %v1290
      %v1295 = vpack.c.b16 %v1293, %v1292
      %1298 = vmatprep.subr.bf16.mxu0 0
      %1299 = vmatpush1.bf16.msra.mxu0 0
      %1300 = vmatprep.subr.bf16.mxu0 0
      %1301 = vmatpush1.bf16.msra.mxu0 0
      %1302 = vmatprep.subr.bf16.mxu0 0
      %1303 = vmatpush1.bf16.msra.mxu0 0
      %1304 = vmatprep.subr.bf16.mxu0 0
      %1305 = vmatpush1.bf16.msra.mxu0 0
      %1306 = vmatprep.subr.bf16.mxu0 0
      %1307 = vmatpush1.bf16.msra.mxu0 0
      %1308 = vmatprep.subr.bf16.mxu0 0
      %1309 = vmatpush1.bf16.msra.mxu0 0
      %1310 = vmatprep.subr.bf16.mxu0 0
      %1311 = vmatpush1.bf16.msra.mxu0 %v1295
      %1312 = vmatprep.subr.bf16.mxu0 0
      %1313 = vmatpush1.bf16.msra.mxu0 %v1294
      %1314 = vmatprep.subr.bf16.mxu0 0
      %1315 = vmatpush2.bf16.msra.mxu0 0
      %1316 = vmatprep.subr.bf16.mxu0 0
      %1317 = vmatpush2.bf16.msra.mxu0 0
      %1318 = vmatprep.subr.bf16.mxu0 0
      %1319 = vmatpush2.bf16.msra.mxu0 0
      %1320 = vmatprep.subr.bf16.mxu0 0
      %1321 = vmatpush2.bf16.msra.mxu0 0
      %1322 = vmatprep.subr.bf16.mxu0 0
      %1323 = vmatpush2.bf16.msra.mxu0 0
      %1324 = vmatprep.subr.bf16.mxu0 0
      %1325 = vmatpush2.bf16.msra.mxu0 0
      %1326 = vmatprep.subr.bf16.mxu0 0
      %1327 = vmatpush2.bf16.msra.mxu0 0
      %1328 = vmatprep.subr.bf16.mxu0 0
      %1329 = vmatpush2.bf16.msra.mxu0 0
      %1330 = vmatprep.mubr.bf16.mxu0 0
      %1331 = vmatmul.mubr.bf16.gmra.mxu0 %v1170
      %v1332 = vpop.f32.mrf.mxu0
      %v1333 = vadd.f32 %v1284, %v1332
      %v1334 = vpop.f32.mrf.mxu0
      %v1335 = vpop.f32.mrf.mxu0
      %v1336 = vpop.f32.mrf.mxu0
      %1337 = vdwg.mxu0
      %vm1338 = vcmask 64512
      %v1340 = vsel %vm1338, %v1207, 0
      %v1343 = vsel %vm1338, %v1270, 0
      %1345 = vmatprep.subr.mxu0 0.0
      %1346 = vmatpush1.xpose.msra.mxu0 0.0
      %1347 = vmatprep.subr.mxu0 0.0
      %1348 = vmatpush1.xpose.msra.mxu0 0.0
      %1349 = vmatprep.subr.mxu0 0.0
      %1350 = vmatpush1.xpose.msra.mxu0 0.0
      %1351 = vmatprep.subr.mxu0 0.0
      %1352 = vmatpush1.xpose.msra.mxu0 0.0
      %1353 = vmatprep.subr.mxu0 0.0
      %1354 = vmatpush1.xpose.msra.mxu0 0.0
      %1355 = vmatprep.subr.mxu0 0.0
      %1356 = vmatpush1.xpose.msra.mxu0 0.0
      %1357 = vmatprep.subr.mxu0 0.0
      %1358 = vmatpush1.xpose.msra.mxu0 0.0
      %1359 = vmatprep.subr.mxu0 0.0
      %1360 = vmatpush1.xpose.msra.mxu0 0.0
      %1361 = vmatprep.subr.mxu0 0.0
      %1362 = vmatpush1.xpose.msra.mxu0 0.0
      %1363 = vmatprep.subr.mxu0 0.0
      %1364 = vmatpush1.xpose.msra.mxu0 0.0
      %1365 = vmatprep.subr.mxu0 0.0
      %1366 = vmatpush1.xpose.msra.mxu0 0.0
      %1367 = vmatprep.subr.mxu0 0.0
      %1368 = vmatpush1.xpose.msra.mxu0 0.0
      %1369 = vmatprep.subr.mxu0 0.0
      %1370 = vmatpush1.xpose.msra.mxu0 0.0
      %1371 = vmatprep.subr.mxu0 0.0
      %1372 = vmatpush1.xpose.msra.mxu0 0.0
      %1373 = vmatprep.subr.mxu0 0.0
      %1374 = vmatpush1.xpose.msra.mxu0 0.0
      %1375 = vmatprep.subr.mxu0 0.0
      %1376 = vmatpush1.xpose.msra.mxu0 %v1343
      %1377 = vmatprep.subr.mxu0 0.0
      %1378 = vmatpush2.xpose.msra.mxu0 0.0
      %1379 = vmatprep.subr.mxu0 0.0
      %1380 = vmatpush2.xpose.msra.mxu0 0.0
      %1381 = vmatprep.subr.mxu0 0.0
      %1382 = vmatpush2.xpose.msra.mxu0 0.0
      %1383 = vmatprep.subr.mxu0 0.0
      %1384 = vmatpush2.xpose.msra.mxu0 0.0
      %1385 = vmatprep.subr.mxu0 0.0
      %1386 = vmatpush2.xpose.msra.mxu0 0.0
      %1387 = vmatprep.subr.mxu0 0.0
      %1388 = vmatpush2.xpose.msra.mxu0 0.0
      %1389 = vmatprep.subr.mxu0 0.0
      %1390 = vmatpush2.xpose.msra.mxu0 0.0
      %1391 = vmatprep.subr.mxu0 0.0
      %1392 = vmatpush2.xpose.msra.mxu0 0.0
      %1393 = vmatprep.subr.mxu0 0.0
      %1394 = vmatpush2.xpose.msra.mxu0 0.0
      %1395 = vmatprep.subr.mxu0 0.0
      %1396 = vmatpush2.xpose.msra.mxu0 0.0
      %1397 = vmatprep.subr.mxu0 0.0
      %1398 = vmatpush2.xpose.msra.mxu0 0.0
      %1399 = vmatprep.subr.mxu0 0.0
      %1400 = vmatpush2.xpose.msra.mxu0 0.0
      %1401 = vmatprep.subr.mxu0 0.0
      %1402 = vmatpush2.xpose.msra.mxu0 0.0
      %1403 = vmatprep.subr.mxu0 0.0
      %1404 = vmatpush2.xpose.msra.mxu0 0.0
      %1405 = vmatprep.subr.mxu0 0.0
      %1406 = vmatpush2.xpose.msra.mxu0 0.0
      %1407 = vmatprep.subr.mxu0 0.0
      %1408 = vmatpush2.xpose.msra.mxu0 0.0
      %1409 = vmatprep.mubr.f32.mxu0 0.0
      %1410 = vmatmul.mubr.f32.gmra.mxu0 %v1340
      %v1411 = vpop.f32.mrf.mxu0
      %v1412 = vadd.f32 0.0, %v1411
      %v1413 = vpop.f32.mrf.mxu0
      %1414 = vdwg.mxu0
      %vm1415 = vcmask 36864
      %v1416 = vsel %vm1415, %v1412, -inf
      %1417 = vmax.xlane.f32.xlu0 %v1416
      %v1418 = vpop.xlane.xlu0 %1417
      %v1419 = vsub.f32 %v1412, %v1418
      %v1420 = vmul.f32 %v1419, 1.442695
      %v1421 = vpow.pop %v1420
      %v1422 = vsel %vm1415, %v1421, 0.0
      %1423 = vadd.xlane.f32.xlu0 %v1422
      %v1424 = vpop.xlane.xlu0 %1423
      %v1425 = vrcp.pop %v1424
      %v1426 = vmul.f32 %v1421, %v1425
      %vm1427 = vcmask 39936
      %v1429 = vsel %vm1427, %v1426, 0
      %vm1431 = vcmask 1044480
      %v1433 = vsel %vm1431, %v1333, 0
      %1435 = vmatprep.subr.mxu0 0.0
      %1436 = vmatpush1.msra.mxu0 0.0
      %1437 = vmatprep.subr.mxu0 0.0
      %1438 = vmatpush1.msra.mxu0 0.0
      %1439 = vmatprep.subr.mxu0 0.0
      %1440 = vmatpush1.msra.mxu0 0.0
      %1441 = vmatprep.subr.mxu0 0.0
      %1442 = vmatpush1.msra.mxu0 0.0
      %1443 = vmatprep.subr.mxu0 0.0
      %1444 = vmatpush1.msra.mxu0 0.0
      %1445 = vmatprep.subr.mxu0 0.0
      %1446 = vmatpush1.msra.mxu0 0.0
      %1447 = vmatprep.subr.mxu0 0.0
      %1448 = vmatpush1.msra.mxu0 0.0
      %1449 = vmatprep.subr.mxu0 0.0
      %1450 = vmatpush1.msra.mxu0 0.0
      %1451 = vmatprep.subr.mxu0 0.0
      %1452 = vmatpush1.msra.mxu0 0.0
      %1453 = vmatprep.subr.mxu0 0.0
      %1454 = vmatpush1.msra.mxu0 0.0
      %1455 = vmatprep.subr.mxu0 0.0
      %1456 = vmatpush1.msra.mxu0 0.0
      %1457 = vmatprep.subr.mxu0 0.0
      %1458 = vmatpush1.msra.mxu0 0.0
      %1459 = vmatprep.subr.mxu0 0.0
      %1460 = vmatpush1.msra.mxu0 0.0
      %1461 = vmatprep.subr.mxu0 0.0
      %1462 = vmatpush1.msra.mxu0 0.0
      %1463 = vmatprep.subr.mxu0 0.0
      %1464 = vmatpush1.msra.mxu0 0.0
      %1465 = vmatprep.subr.mxu0 0.0
      %1466 = vmatpush1.msra.mxu0 %v1433
      %1467 = vmatprep.subr.mxu0 0.0
      %1468 = vmatpush2.msra.mxu0 0.0
      %1469 = vmatprep.subr.mxu0 0.0
      %1470 = vmatpush2.msra.mxu0 0.0
      %1471 = vmatprep.subr.mxu0 0.0
      %1472 = vmatpush2.msra.mxu0 0.0
      %1473 = vmatprep.subr.mxu0 0.0
      %1474 = vmatpush2.msra.mxu0 0.0
      %1475 = vmatprep.subr.mxu0 0.0
      %1476 = vmatpush2.msra.mxu0 0.0
      %1477 = vmatprep.subr.mxu0 0.0
      %1478 = vmatpush2.msra.mxu0 0.0
      %1479 = vmatprep.subr.mxu0 0.0
      %1480 = vmatpush2.msra.mxu0 0.0
      %1481 = vmatprep.subr.mxu0 0.0
      %1482 = vmatpush2.msra.mxu0 0.0
      %1483 = vmatprep.subr.mxu0 0.0
      %1484 = vmatpush2.msra.mxu0 0.0
      %1485 = vmatprep.subr.mxu0 0.0
      %1486 = vmatpush2.msra.mxu0 0.0
      %1487 = vmatprep.subr.mxu0 0.0
      %1488 = vmatpush2.msra.mxu0 0.0
      %1489 = vmatprep.subr.mxu0 0.0
      %1490 = vmatpush2.msra.mxu0 0.0
      %1491 = vmatprep.subr.mxu0 0.0
      %1492 = vmatpush2.msra.mxu0 0.0
      %1493 = vmatprep.subr.mxu0 0.0
      %1494 = vmatpush2.msra.mxu0 0.0
      %1495 = vmatprep.subr.mxu0 0.0
      %1496 = vmatpush2.msra.mxu0 0.0
      %1497 = vmatprep.subr.mxu0 0.0
      %1498 = vmatpush2.msra.mxu0 0.0
      %1499 = vmatprep.mubr.f32.mxu0 0.0
      %1500 = vmatmul.mubr.f32.gmra.mxu0 %v1429
      %v1501 = vpop.f32.mrf.mxu0
      %v1502 = vadd.f32 0.0, %v1501
      %v1503 = vpop.f32.mrf.mxu0
      %1504 = vdwg.mxu0
      %1505 = vrot.lane.b32.xlu0 %v1207, 120
      %v1506 = vpop.permute.xlu0 %1505
      %1507 = vrot.lane.b32.xlu0 %v1270, 120
      %v1508 = vpop.permute.xlu0 %1507
      %v1509 = vsel %vm1338, %v1506, 0
      %v1511 = vsel %vm1338, %v1508, 0
      %1513 = vmatprep.subr.mxu0 0.0
      %1514 = vmatpush1.xpose.msra.mxu0 0.0
      %1515 = vmatprep.subr.mxu0 0.0
      %1516 = vmatpush1.xpose.msra.mxu0 0.0
      %1517 = vmatprep.subr.mxu0 0.0
      %1518 = vmatpush1.xpose.msra.mxu0 0.0
      %1519 = vmatprep.subr.mxu0 0.0
      %1520 = vmatpush1.xpose.msra.mxu0 0.0
      %1521 = vmatprep.subr.mxu0 0.0
      %1522 = vmatpush1.xpose.msra.mxu0 0.0
      %1523 = vmatprep.subr.mxu0 0.0
      %1524 = vmatpush1.xpose.msra.mxu0 0.0
      %1525 = vmatprep.subr.mxu0 0.0
      %1526 = vmatpush1.xpose.msra.mxu0 0.0
      %1527 = vmatprep.subr.mxu0 0.0
      %1528 = vmatpush1.xpose.msra.mxu0 0.0
      %1529 = vmatprep.subr.mxu0 0.0
      %1530 = vmatpush1.xpose.msra.mxu0 0.0
      %1531 = vmatprep.subr.mxu0 0.0
      %1532 = vmatpush1.xpose.msra.mxu0 0.0
      %1533 = vmatprep.subr.mxu0 0.0
      %1534 = vmatpush1.xpose.msra.mxu0 0.0
      %1535 = vmatprep.subr.mxu0 0.0
      %1536 = vmatpush1.xpose.msra.mxu0 0.0
      %1537 = vmatprep.subr.mxu0 0.0
      %1538 = vmatpush1.xpose.msra.mxu0 0.0
      %1539 = vmatprep.subr.mxu0 0.0
      %1540 = vmatpush1.xpose.msra.mxu0 0.0
      %1541 = vmatprep.subr.mxu0 0.0
      %1542 = vmatpush1.xpose.msra.mxu0 0.0
      %1543 = vmatprep.subr.mxu0 0.0
      %1544 = vmatpush1.xpose.msra.mxu0 %v1511
      %1545 = vmatprep.subr.mxu0 0.0
      %1546 = vmatpush2.xpose.msra.mxu0 0.0
      %1547 = vmatprep.subr.mxu0 0.0
      %1548 = vmatpush2.xpose.msra.mxu0 0.0
      %1549 = vmatprep.subr.mxu0 0.0
      %1550 = vmatpush2.xpose.msra.mxu0 0.0
      %1551 = vmatprep.subr.mxu0 0.0
      %1552 = vmatpush2.xpose.msra.mxu0 0.0
      %1553 = vmatprep.subr.mxu0 0.0
      %1554 = vmatpush2.xpose.msra.mxu0 0.0
      %1555 = vmatprep.subr.mxu0 0.0
      %1556 = vmatpush2.xpose.msra.mxu0 0.0
      %1557 = vmatprep.subr.mxu0 0.0
      %1558 = vmatpush2.xpose.msra.mxu0 0.0
      %1559 = vmatprep.subr.mxu0 0.0
      %1560 = vmatpush2.xpose.msra.mxu0 0.0
      %1561 = vmatprep.subr.mxu0 0.0
      %1562 = vmatpush2.xpose.msra.mxu0 0.0
      %1563 = vmatprep.subr.mxu0 0.0
      %1564 = vmatpush2.xpose.msra.mxu0 0.0
      %1565 = vmatprep.subr.mxu0 0.0
      %1566 = vmatpush2.xpose.msra.mxu0 0.0
      %1567 = vmatprep.subr.mxu0 0.0
      %1568 = vmatpush2.xpose.msra.mxu0 0.0
      %1569 = vmatprep.subr.mxu0 0.0
      %1570 = vmatpush2.xpose.msra.mxu0 0.0
      %1571 = vmatprep.subr.mxu0 0.0
      %1572 = vmatpush2.xpose.msra.mxu0 0.0
      %1573 = vmatprep.subr.mxu0 0.0
      %1574 = vmatpush2.xpose.msra.mxu0 0.0
      %1575 = vmatprep.subr.mxu0 0.0
      %1576 = vmatpush2.xpose.msra.mxu0 0.0
      %1577 = vmatprep.mubr.f32.mxu0 0.0
      %1578 = vmatmul.mubr.f32.gmra.mxu0 %v1509
      %v1579 = vpop.f32.mrf.mxu0
      %v1580 = vadd.f32 0.0, %v1579
      %v1581 = vpop.f32.mrf.mxu0
      %1582 = vdwg.mxu0
      %v1583 = vsel %vm1415, %v1580, -inf
      %1584 = vmax.xlane.f32.xlu0 %v1583
      %v1585 = vpop.xlane.xlu0 %1584
      %v1586 = vsub.f32 %v1580, %v1585
      %v1587 = vmul.f32 %v1586, 1.442695
      %v1588 = vpow.pop %v1587
      %v1589 = vsel %vm1415, %v1588, 0.0
      %1590 = vadd.xlane.f32.xlu0 %v1589
      %v1591 = vpop.xlane.xlu0 %1590
      %v1592 = vrcp.pop %v1591
      %v1593 = vmul.f32 %v1588, %v1592
      %1594 = vrot.lane.b32.xlu0 %v1333, 120
      %v1595 = vpop.permute.xlu0 %1594
      %v1597 = vsel %vm1427, %v1593, 0
      %v1599 = vsel %vm1431, %v1595, 0
      %1601 = vmatprep.subr.mxu0 0.0
      %1602 = vmatpush1.msra.mxu0 0.0
      %1603 = vmatprep.subr.mxu0 0.0
      %1604 = vmatpush1.msra.mxu0 0.0
      %1605 = vmatprep.subr.mxu0 0.0
      %1606 = vmatpush1.msra.mxu0 0.0
      %1607 = vmatprep.subr.mxu0 0.0
      %1608 = vmatpush1.msra.mxu0 0.0
      %1609 = vmatprep.subr.mxu0 0.0
      %1610 = vmatpush1.msra.mxu0 0.0
      %1611 = vmatprep.subr.mxu0 0.0
      %1612 = vmatpush1.msra.mxu0 0.0
      %1613 = vmatprep.subr.mxu0 0.0
      %1614 = vmatpush1.msra.mxu0 0.0
      %1615 = vmatprep.subr.mxu0 0.0
      %1616 = vmatpush1.msra.mxu0 0.0
      %1617 = vmatprep.subr.mxu0 0.0
      %1618 = vmatpush1.msra.mxu0 0.0
      %1619 = vmatprep.subr.mxu0 0.0
      %1620 = vmatpush1.msra.mxu0 0.0
      %1621 = vmatprep.subr.mxu0 0.0
      %1622 = vmatpush1.msra.mxu0 0.0
      %1623 = vmatprep.subr.mxu0 0.0
      %1624 = vmatpush1.msra.mxu0 0.0
      %1625 = vmatprep.subr.mxu0 0.0
      %1626 = vmatpush1.msra.mxu0 0.0
      %1627 = vmatprep.subr.mxu0 0.0
      %1628 = vmatpush1.msra.mxu0 0.0
      %1629 = vmatprep.subr.mxu0 0.0
      %1630 = vmatpush1.msra.mxu0 0.0
      %1631 = vmatprep.subr.mxu0 0.0
      %1632 = vmatpush1.msra.mxu0 %v1599
      %1633 = vmatprep.subr.mxu0 0.0
      %1634 = vmatpush2.msra.mxu0 0.0
      %1635 = vmatprep.subr.mxu0 0.0
      %1636 = vmatpush2.msra.mxu0 0.0
      %1637 = vmatprep.subr.mxu0 0.0
      %1638 = vmatpush2.msra.mxu0 0.0
      %1639 = vmatprep.subr.mxu0 0.0
      %1640 = vmatpush2.msra.mxu0 0.0
      %1641 = vmatprep.subr.mxu0 0.0
      %1642 = vmatpush2.msra.mxu0 0.0
      %1643 = vmatprep.subr.mxu0 0.0
      %1644 = vmatpush2.msra.mxu0 0.0
      %1645 = vmatprep.subr.mxu0 0.0
      %1646 = vmatpush2.msra.mxu0 0.0
      %1647 = vmatprep.subr.mxu0 0.0
      %1648 = vmatpush2.msra.mxu0 0.0
      %1649 = vmatprep.subr.mxu0 0.0
      %1650 = vmatpush2.msra.mxu0 0.0
      %1651 = vmatprep.subr.mxu0 0.0
      %1652 = vmatpush2.msra.mxu0 0.0
      %1653 = vmatprep.subr.mxu0 0.0
      %1654 = vmatpush2.msra.mxu0 0.0
      %1655 = vmatprep.subr.mxu0 0.0
      %1656 = vmatpush2.msra.mxu0 0.0
      %1657 = vmatprep.subr.mxu0 0.0
      %1658 = vmatpush2.msra.mxu0 0.0
      %1659 = vmatprep.subr.mxu0 0.0
      %1660 = vmatpush2.msra.mxu0 0.0
      %1661 = vmatprep.subr.mxu0 0.0
      %1662 = vmatpush2.msra.mxu0 0.0
      %1663 = vmatprep.subr.mxu0 0.0
      %1664 = vmatpush2.msra.mxu0 0.0
      %1665 = vmatprep.mubr.f32.mxu0 0.0
      %1666 = vmatmul.mubr.f32.gmra.mxu0 %v1597
      %v1667 = vpop.f32.mrf.mxu0
      %v1668 = vadd.f32 0.0, %v1667
      %v1669 = vpop.f32.mrf.mxu0
      %1670 = vdwg.mxu0
      %1671 = vrot.lane.b32.xlu0 %v1207, 112
      %v1672 = vpop.permute.xlu0 %1671
      %1673 = vrot.lane.b32.xlu0 %v1270, 112
      %v1674 = vpop.permute.xlu0 %1673
      %v1675 = vsel %vm1338, %v1672, 0
      %v1677 = vsel %vm1338, %v1674, 0
      %1679 = vmatprep.subr.mxu0 0.0
      %1680 = vmatpush1.xpose.msra.mxu0 0.0
      %1681 = vmatprep.subr.mxu0 0.0
      %1682 = vmatpush1.xpose.msra.mxu0 0.0
      %1683 = vmatprep.subr.mxu0 0.0
      %1684 = vmatpush1.xpose.msra.mxu0 0.0
      %1685 = vmatprep.subr.mxu0 0.0
      %1686 = vmatpush1.xpose.msra.mxu0 0.0
      %1687 = vmatprep.subr.mxu0 0.0
      %1688 = vmatpush1.xpose.msra.mxu0 0.0
      %1689 = vmatprep.subr.mxu0 0.0
      %1690 = vmatpush1.xpose.msra.mxu0 0.0
      %1691 = vmatprep.subr.mxu0 0.0
      %1692 = vmatpush1.xpose.msra.mxu0 0.0
      %1693 = vmatprep.subr.mxu0 0.0
      %1694 = vmatpush1.xpose.msra.mxu0 0.0
      %1695 = vmatprep.subr.mxu0 0.0
      %1696 = vmatpush1.xpose.msra.mxu0 0.0
      %1697 = vmatprep.subr.mxu0 0.0
      %1698 = vmatpush1.xpose.msra.mxu0 0.0
      %1699 = vmatprep.subr.mxu0 0.0
      %1700 = vmatpush1.xpose.msra.mxu0 0.0
      %1701 = vmatprep.subr.mxu0 0.0
      %1702 = vmatpush1.xpose.msra.mxu0 0.0
      %1703 = vmatprep.subr.mxu0 0.0
      %1704 = vmatpush1.xpose.msra.mxu0 0.0
      %1705 = vmatprep.subr.mxu0 0.0
      %1706 = vmatpush1.xpose.msra.mxu0 0.0
      %1707 = vmatprep.subr.mxu0 0.0
      %1708 = vmatpush1.xpose.msra.mxu0 0.0
      %1709 = vmatprep.subr.mxu0 0.0
      %1710 = vmatpush1.xpose.msra.mxu0 %v1677
      %1711 = vmatprep.subr.mxu0 0.0
      %1712 = vmatpush2.xpose.msra.mxu0 0.0
      %1713 = vmatprep.subr.mxu0 0.0
      %1714 = vmatpush2.xpose.msra.mxu0 0.0
      %1715 = vmatprep.subr.mxu0 0.0
      %1716 = vmatpush2.xpose.msra.mxu0 0.0
      %1717 = vmatprep.subr.mxu0 0.0
      %1718 = vmatpush2.xpose.msra.mxu0 0.0
      %1719 = vmatprep.subr.mxu0 0.0
      %1720 = vmatpush2.xpose.msra.mxu0 0.0
      %1721 = vmatprep.subr.mxu0 0.0
      %1722 = vmatpush2.xpose.msra.mxu0 0.0
      %1723 = vmatprep.subr.mxu0 0.0
      %1724 = vmatpush2.xpose.msra.mxu0 0.0
      %1725 = vmatprep.subr.mxu0 0.0
      %1726 = vmatpush2.xpose.msra.mxu0 0.0
      %1727 = vmatprep.subr.mxu0 0.0
      %1728 = vmatpush2.xpose.msra.mxu0 0.0
      %1729 = vmatprep.subr.mxu0 0.0
      %1730 = vmatpush2.xpose.msra.mxu0 0.0
      %1731 = vmatprep.subr.mxu0 0.0
      %1732 = vmatpush2.xpose.msra.mxu0 0.0
      %1733 = vmatprep.subr.mxu0 0.0
      %1734 = vmatpush2.xpose.msra.mxu0 0.0
      %1735 = vmatprep.subr.mxu0 0.0
      %1736 = vmatpush2.xpose.msra.mxu0 0.0
      %1737 = vmatprep.subr.mxu0 0.0
      %1738 = vmatpush2.xpose.msra.mxu0 0.0
      %1739 = vmatprep.subr.mxu0 0.0
      %1740 = vmatpush2.xpose.msra.mxu0 0.0
      %1741 = vmatprep.subr.mxu0 0.0
      %1742 = vmatpush2.xpose.msra.mxu0 0.0
      %1743 = vmatprep.mubr.f32.mxu0 0.0
      %1744 = vmatmul.mubr.f32.gmra.mxu0 %v1675
      %v1745 = vpop.f32.mrf.mxu0
      %v1746 = vadd.f32 0.0, %v1745
      %v1747 = vpop.f32.mrf.mxu0
      %1748 = vdwg.mxu0
      %v1749 = vsel %vm1415, %v1746, -inf
      %1750 = vmax.xlane.f32.xlu0 %v1749
      %v1751 = vpop.xlane.xlu0 %1750
      %v1752 = vsub.f32 %v1746, %v1751
      %v1753 = vmul.f32 %v1752, 1.442695
      %v1754 = vpow.pop %v1753
      %v1755 = vsel %vm1415, %v1754, 0.0
      %1756 = vadd.xlane.f32.xlu0 %v1755
      %v1757 = vpop.xlane.xlu0 %1756
      %v1758 = vrcp.pop %v1757
      %v1759 = vmul.f32 %v1754, %v1758
      %1760 = vrot.lane.b32.xlu0 %v1333, 112
      %v1761 = vpop.permute.xlu0 %1760
      %v1763 = vsel %vm1427, %v1759, 0
      %v1765 = vsel %vm1431, %v1761, 0
      %1767 = vmatprep.subr.mxu0 0.0
      %1768 = vmatpush1.msra.mxu0 0.0
      %1769 = vmatprep.subr.mxu0 0.0
      %1770 = vmatpush1.msra.mxu0 0.0
      %1771 = vmatprep.subr.mxu0 0.0
      %1772 = vmatpush1.msra.mxu0 0.0
      %1773 = vmatprep.subr.mxu0 0.0
      %1774 = vmatpush1.msra.mxu0 0.0
      %1775 = vmatprep.subr.mxu0 0.0
      %1776 = vmatpush1.msra.mxu0 0.0
      %1777 = vmatprep.subr.mxu0 0.0
      %1778 = vmatpush1.msra.mxu0 0.0
      %1779 = vmatprep.subr.mxu0 0.0
      %1780 = vmatpush1.msra.mxu0 0.0
      %1781 = vmatprep.subr.mxu0 0.0
      %1782 = vmatpush1.msra.mxu0 0.0
      %1783 = vmatprep.subr.mxu0 0.0
      %1784 = vmatpush1.msra.mxu0 0.0
      %1785 = vmatprep.subr.mxu0 0.0
      %1786 = vmatpush1.msra.mxu0 0.0
      %1787 = vmatprep.subr.mxu0 0.0
      %1788 = vmatpush1.msra.mxu0 0.0
      %1789 = vmatprep.subr.mxu0 0.0
      %1790 = vmatpush1.msra.mxu0 0.0
      %1791 = vmatprep.subr.mxu0 0.0
      %1792 = vmatpush1.msra.mxu0 0.0
      %1793 = vmatprep.subr.mxu0 0.0
      %1794 = vmatpush1.msra.mxu0 0.0
      %1795 = vmatprep.subr.mxu0 0.0
      %1796 = vmatpush1.msra.mxu0 0.0
      %1797 = vmatprep.subr.mxu0 0.0
      %1798 = vmatpush1.msra.mxu0 %v1765
      %1799 = vmatprep.subr.mxu0 0.0
      %1800 = vmatpush2.msra.mxu0 0.0
      %1801 = vmatprep.subr.mxu0 0.0
      %1802 = vmatpush2.msra.mxu0 0.0
      %1803 = vmatprep.subr.mxu0 0.0
      %1804 = vmatpush2.msra.mxu0 0.0
      %1805 = vmatprep.subr.mxu0 0.0
      %1806 = vmatpush2.msra.mxu0 0.0
      %1807 = vmatprep.subr.mxu0 0.0
      %1808 = vmatpush2.msra.mxu0 0.0
      %1809 = vmatprep.subr.mxu0 0.0
      %1810 = vmatpush2.msra.mxu0 0.0
      %1811 = vmatprep.subr.mxu0 0.0
      %1812 = vmatpush2.msra.mxu0 0.0
      %1813 = vmatprep.subr.mxu0 0.0
      %1814 = vmatpush2.msra.mxu0 0.0
      %1815 = vmatprep.subr.mxu0 0.0
      %1816 = vmatpush2.msra.mxu0 0.0
      %1817 = vmatprep.subr.mxu0 0.0
      %1818 = vmatpush2.msra.mxu0 0.0
      %1819 = vmatprep.subr.mxu0 0.0
      %1820 = vmatpush2.msra.mxu0 0.0
      %1821 = vmatprep.subr.mxu0 0.0
      %1822 = vmatpush2.msra.mxu0 0.0
      %1823 = vmatprep.subr.mxu0 0.0
      %1824 = vmatpush2.msra.mxu0 0.0
      %1825 = vmatprep.subr.mxu0 0.0
      %1826 = vmatpush2.msra.mxu0 0.0
      %1827 = vmatprep.subr.mxu0 0.0
      %1828 = vmatpush2.msra.mxu0 0.0
      %1829 = vmatprep.subr.mxu0 0.0
      %1830 = vmatpush2.msra.mxu0 0.0
      %1831 = vmatprep.mubr.f32.mxu0 0.0
      %1832 = vmatmul.mubr.f32.gmra.mxu0 %v1763
      %v1833 = vpop.f32.mrf.mxu0
      %v1834 = vadd.f32 0.0, %v1833
      %v1835 = vpop.f32.mrf.mxu0
      %1836 = vdwg.mxu0
      %1837 = vrot.lane.b32.xlu0 %v1207, 104
      %v1838 = vpop.permute.xlu0 %1837
      %1839 = vrot.lane.b32.xlu0 %v1270, 104
      %v1840 = vpop.permute.xlu0 %1839
      %v1841 = vsel %vm1338, %v1838, 0
      %v1843 = vsel %vm1338, %v1840, 0
      %1845 = vmatprep.subr.mxu0 0.0
      %1846 = vmatpush1.xpose.msra.mxu0 0.0
      %1847 = vmatprep.subr.mxu0 0.0
      %1848 = vmatpush1.xpose.msra.mxu0 0.0
      %1849 = vmatprep.subr.mxu0 0.0
      %1850 = vmatpush1.xpose.msra.mxu0 0.0
      %1851 = vmatprep.subr.mxu0 0.0
      %1852 = vmatpush1.xpose.msra.mxu0 0.0
      %1853 = vmatprep.subr.mxu0 0.0
      %1854 = vmatpush1.xpose.msra.mxu0 0.0
      %1855 = vmatprep.subr.mxu0 0.0
      %1856 = vmatpush1.xpose.msra.mxu0 0.0
      %1857 = vmatprep.subr.mxu0 0.0
      %1858 = vmatpush1.xpose.msra.mxu0 0.0
      %1859 = vmatprep.subr.mxu0 0.0
      %1860 = vmatpush1.xpose.msra.mxu0 0.0
      %1861 = vmatprep.subr.mxu0 0.0
      %1862 = vmatpush1.xpose.msra.mxu0 0.0
      %1863 = vmatprep.subr.mxu0 0.0
      %1864 = vmatpush1.xpose.msra.mxu0 0.0
      %1865 = vmatprep.subr.mxu0 0.0
      %1866 = vmatpush1.xpose.msra.mxu0 0.0
      %1867 = vmatprep.subr.mxu0 0.0
      %1868 = vmatpush1.xpose.msra.mxu0 0.0
      %1869 = vmatprep.subr.mxu0 0.0
      %1870 = vmatpush1.xpose.msra.mxu0 0.0
      %1871 = vmatprep.subr.mxu0 0.0
      %1872 = vmatpush1.xpose.msra.mxu0 0.0
      %1873 = vmatprep.subr.mxu0 0.0
      %1874 = vmatpush1.xpose.msra.mxu0 0.0
      %1875 = vmatprep.subr.mxu0 0.0
      %1876 = vmatpush1.xpose.msra.mxu0 %v1843
      %1877 = vmatprep.subr.mxu0 0.0
      %1878 = vmatpush2.xpose.msra.mxu0 0.0
      %1879 = vmatprep.subr.mxu0 0.0
      %1880 = vmatpush2.xpose.msra.mxu0 0.0
      %1881 = vmatprep.subr.mxu0 0.0
      %1882 = vmatpush2.xpose.msra.mxu0 0.0
      %1883 = vmatprep.subr.mxu0 0.0
      %1884 = vmatpush2.xpose.msra.mxu0 0.0
      %1885 = vmatprep.subr.mxu0 0.0
      %1886 = vmatpush2.xpose.msra.mxu0 0.0
      %1887 = vmatprep.subr.mxu0 0.0
      %1888 = vmatpush2.xpose.msra.mxu0 0.0
      %1889 = vmatprep.subr.mxu0 0.0
      %1890 = vmatpush2.xpose.msra.mxu0 0.0
      %1891 = vmatprep.subr.mxu0 0.0
      %1892 = vmatpush2.xpose.msra.mxu0 0.0
      %1893 = vmatprep.subr.mxu0 0.0
      %1894 = vmatpush2.xpose.msra.mxu0 0.0
      %1895 = vmatprep.subr.mxu0 0.0
      %1896 = vmatpush2.xpose.msra.mxu0 0.0
      %1897 = vmatprep.subr.mxu0 0.0
      %1898 = vmatpush2.xpose.msra.mxu0 0.0
      %1899 = vmatprep.subr.mxu0 0.0
      %1900 = vmatpush2.xpose.msra.mxu0 0.0
      %1901 = vmatprep.subr.mxu0 0.0
      %1902 = vmatpush2.xpose.msra.mxu0 0.0
      %1903 = vmatprep.subr.mxu0 0.0
      %1904 = vmatpush2.xpose.msra.mxu0 0.0
      %1905 = vmatprep.subr.mxu0 0.0
      %1906 = vmatpush2.xpose.msra.mxu0 0.0
      %1907 = vmatprep.subr.mxu0 0.0
      %1908 = vmatpush2.xpose.msra.mxu0 0.0
      %1909 = vmatprep.mubr.f32.mxu0 0.0
      %1910 = vmatmul.mubr.f32.gmra.mxu0 %v1841
      %v1911 = vpop.f32.mrf.mxu0
      %v1912 = vadd.f32 0.0, %v1911
      %v1913 = vpop.f32.mrf.mxu0
      %1914 = vdwg.mxu0
      %v1915 = vsel %vm1415, %v1912, -inf
      %1916 = vmax.xlane.f32.xlu0 %v1915
      %v1917 = vpop.xlane.xlu0 %1916
      %v1918 = vsub.f32 %v1912, %v1917
      %v1919 = vmul.f32 %v1918, 1.442695
      %v1920 = vpow.pop %v1919
      %v1921 = vsel %vm1415, %v1920, 0.0
      %1922 = vadd.xlane.f32.xlu0 %v1921
      %v1923 = vpop.xlane.xlu0 %1922
      %v1924 = vrcp.pop %v1923
      %v1925 = vmul.f32 %v1920, %v1924
      %1926 = vrot.lane.b32.xlu0 %v1333, 104
      %v1927 = vpop.permute.xlu0 %1926
      %v1929 = vsel %vm1427, %v1925, 0
      %v1931 = vsel %vm1431, %v1927, 0
      %1933 = vmatprep.subr.mxu0 0.0
      %1934 = vmatpush1.msra.mxu0 0.0
      %1935 = vmatprep.subr.mxu0 0.0
      %1936 = vmatpush1.msra.mxu0 0.0
      %1937 = vmatprep.subr.mxu0 0.0
      %1938 = vmatpush1.msra.mxu0 0.0
      %1939 = vmatprep.subr.mxu0 0.0
      %1940 = vmatpush1.msra.mxu0 0.0
      %1941 = vmatprep.subr.mxu0 0.0
      %1942 = vmatpush1.msra.mxu0 0.0
      %1943 = vmatprep.subr.mxu0 0.0
      %1944 = vmatpush1.msra.mxu0 0.0
      %1945 = vmatprep.subr.mxu0 0.0
      %1946 = vmatpush1.msra.mxu0 0.0
      %1947 = vmatprep.subr.mxu0 0.0
      %1948 = vmatpush1.msra.mxu0 0.0
      %1949 = vmatprep.subr.mxu0 0.0
      %1950 = vmatpush1.msra.mxu0 0.0
      %1951 = vmatprep.subr.mxu0 0.0
      %1952 = vmatpush1.msra.mxu0 0.0
      %1953 = vmatprep.subr.mxu0 0.0
      %1954 = vmatpush1.msra.mxu0 0.0
      %1955 = vmatprep.subr.mxu0 0.0
      %1956 = vmatpush1.msra.mxu0 0.0
      %1957 = vmatprep.subr.mxu0 0.0
      %1958 = vmatpush1.msra.mxu0 0.0
      %1959 = vmatprep.subr.mxu0 0.0
      %1960 = vmatpush1.msra.mxu0 0.0
      %1961 = vmatprep.subr.mxu0 0.0
      %1962 = vmatpush1.msra.mxu0 0.0
      %1963 = vmatprep.subr.mxu0 0.0
      %1964 = vmatpush1.msra.mxu0 %v1931
      %1965 = vmatprep.subr.mxu0 0.0
      %1966 = vmatpush2.msra.mxu0 0.0
      %1967 = vmatprep.subr.mxu0 0.0
      %1968 = vmatpush2.msra.mxu0 0.0
      %1969 = vmatprep.subr.mxu0 0.0
      %1970 = vmatpush2.msra.mxu0 0.0
      %1971 = vmatprep.subr.mxu0 0.0
      %1972 = vmatpush2.msra.mxu0 0.0
      %1973 = vmatprep.subr.mxu0 0.0
      %1974 = vmatpush2.msra.mxu0 0.0
      %1975 = vmatprep.subr.mxu0 0.0
      %1976 = vmatpush2.msra.mxu0 0.0
      %1977 = vmatprep.subr.mxu0 0.0
      %1978 = vmatpush2.msra.mxu0 0.0
      %1979 = vmatprep.subr.mxu0 0.0
      %1980 = vmatpush2.msra.mxu0 0.0
      %1981 = vmatprep.subr.mxu0 0.0
      %1982 = vmatpush2.msra.mxu0 0.0
      %1983 = vmatprep.subr.mxu0 0.0
      %1984 = vmatpush2.msra.mxu0 0.0
      %1985 = vmatprep.subr.mxu0 0.0
      %1986 = vmatpush2.msra.mxu0 0.0
      %1987 = vmatprep.subr.mxu0 0.0
      %1988 = vmatpush2.msra.mxu0 0.0
      %1989 = vmatprep.subr.mxu0 0.0
      %1990 = vmatpush2.msra.mxu0 0.0
      %1991 = vmatprep.subr.mxu0 0.0
      %1992 = vmatpush2.msra.mxu0 0.0
      %1993 = vmatprep.subr.mxu0 0.0
      %1994 = vmatpush2.msra.mxu0 0.0
      %1995 = vmatprep.subr.mxu0 0.0
      %1996 = vmatpush2.msra.mxu0 0.0
      %1997 = vmatprep.mubr.f32.mxu0 0.0
      %1998 = vmatmul.mubr.f32.gmra.mxu0 %v1929
      %v1999 = vpop.f32.mrf.mxu0
      %v2000 = vadd.f32 0.0, %v1999
      %v2001 = vpop.f32.mrf.mxu0
      %2002 = vdwg.mxu0
      %2004 = vrot.lane.b32.xlu0 %v1668, 8
      %v2005 = vpop.permute.xlu0 %2004
      %2008 = vrot.lane.b32.xlu0 %v1834, 16
      %v2009 = vpop.permute.xlu0 %2008
      %2012 = vrot.lane.b32.xlu0 %v2000, 24
      %v2013 = vpop.permute.xlu0 %2012
      %v2015 = vsel %vm1338, %v1502, %v2005
      %vm2016 = vcmask 130048
      %v2017 = vsel %vm2016, %v2015, %v2009
      %vm2018 = vcmask 195584
      %v2019 = vsel %vm2018, %v2017, %v2013
      %v2020 = vpack.c.bf16 %v2019, %v2019
      %v2021 = vld [vmem:[%s897] sm:$0xf]
      %v2022 = vld [vmem:[%s897 + $0x4] sm:$0xf]
      %v2023 = vld [vmem:[%s897 + $0x8] sm:$0xf]
      %v2024 = vld [vmem:[%s897 + $0xc] sm:$0xf]
      %v2025 = vld [vmem:[%s900] sm:$0x1]
      %v2027 = vlaneseq
      %v2028 = vshrl.u32 %v2027, 7
      %v2029 = vsub.s32 0, %v2028
      %v2030 = vrot.slane %v2025, %v2029
      %v2036 = vunpack.c.l.b16 %v2021
      %v2037 = vunpack.c.l.b16 %v2022
      %v2038 = vunpack.c.l.b16 %v2023
      %v2039 = vunpack.c.l.b16 %v2024
      %v2040 = vpack.c.b16 %v2037, %v2036
      %v2041 = vpack.c.b16 %v2039, %v2038
      %v2045 = vsel %vm1168, %v2020, 0
      %2047 = vmatprep.subr.bf16.mxu0 0
      %2048 = vmatpush1.bf16.msra.mxu0 0
      %2049 = vmatprep.subr.bf16.mxu0 0
      %2050 = vmatpush1.bf16.msra.mxu0 0
      %2051 = vmatprep.subr.bf16.mxu0 0
      %2052 = vmatpush1.bf16.msra.mxu0 0
      %2053 = vmatprep.subr.bf16.mxu0 0
      %2054 = vmatpush1.bf16.msra.mxu0 0
      %2055 = vmatprep.subr.bf16.mxu0 0
      %2056 = vmatpush1.bf16.msra.mxu0 0
      %2057 = vmatprep.subr.bf16.mxu0 0
      %2058 = vmatpush1.bf16.msra.mxu0 0
      %2059 = vmatprep.subr.bf16.mxu0 0
      %2060 = vmatpush1.bf16.msra.mxu0 %v2041
      %2061 = vmatprep.subr.bf16.mxu0 0
      %2062 = vmatpush1.bf16.msra.mxu0 %v2040
      %2063 = vmatprep.subr.bf16.mxu0 0
      %2064 = vmatpush2.bf16.msra.mxu0 0
      %2065 = vmatprep.subr.bf16.mxu0 0
      %2066 = vmatpush2.bf16.msra.mxu0 0
      %2067 = vmatprep.subr.bf16.mxu0 0
      %2068 = vmatpush2.bf16.msra.mxu0 0
      %2069 = vmatprep.subr.bf16.mxu0 0
      %2070 = vmatpush2.bf16.msra.mxu0 0
      %2071 = vmatprep.subr.bf16.mxu0 0
      %2072 = vmatpush2.bf16.msra.mxu0 0
      %2073 = vmatprep.subr.bf16.mxu0 0
      %2074 = vmatpush2.bf16.msra.mxu0 0
      %2075 = vmatprep.subr.bf16.mxu0 0
      %2076 = vmatpush2.bf16.msra.mxu0 0
      %2077 = vmatprep.subr.bf16.mxu0 0
      %2078 = vmatpush2.bf16.msra.mxu0 0
      %2079 = vmatprep.mubr.bf16.mxu0 0
      %2080 = vmatmul.mubr.bf16.gmra.mxu0 %v2045
      %v2081 = vpop.f32.mrf.mxu0
      %v2082 = vadd.f32 %v2030, %v2081
      %v2083 = vpop.f32.mrf.mxu0
      %v2084 = vpop.f32.mrf.mxu0
      %v2085 = vpop.f32.mrf.mxu0
      %2086 = vdwg.mxu0
      %v2087 = vadd.f32 %v1112, %v2082
      %v2088 = vsel %vm1113, %v2087, 0.0
      %2089 = vadd.xlane.f32.xlu0 %v2088
      %v2090 = vpop.xlane.xlu0 %2089
      %v2091 = vmul.f32 %v2090, %v1117
      %v2092 = vsub.f32 %v2087, %v2091
      %v2093 = vmul.f32 %v2092, %v2092
      %v2094 = vsel %vm1113, %v2093, 0.0
      %2095 = vadd.xlane.f32.xlu0 %v2094
      %v2096 = vpop.xlane.xlu0 %2095
      %v2097 = vmul.f32 %v2096, %v1117
      %v2098 = vadd.f32 %v2097, 1e-05
      %v2099 = vrsqrt.pop %v2098
      %v2100 = vmul.f32 %v2092, %v2099
      %v2101 = vld [vmem:[%s903] sm:$0x1]
      %v2103 = vlaneseq
      %v2104 = vshrl.u32 %v2103, 7
      %v2105 = vsub.s32 0, %v2104
      %v2106 = vrot.slane %v2101, %v2105
      %v2108 = vmul.f32 %v2100, %v2106
      %v2109 = vld [vmem:[%s906] sm:$0x1]
      %v2111 = vlaneseq
      %v2112 = vshrl.u32 %v2111, 7
      %v2113 = vsub.s32 0, %v2112
      %v2114 = vrot.slane %v2109, %v2113
      %v2116 = vadd.f32 %v2108, %v2114
      %v2117 = vpack.c.bf16 %v2116, %v2116
      %v2118 = vld [vmem:[%s911] sm:$0xf]
      %v2119 = vld [vmem:[%s911 + $0x4] sm:$0xf]
      %v2120 = vld [vmem:[%s911 + $0x8] sm:$0xf]
      %v2121 = vld [vmem:[%s911 + $0xc] sm:$0xf]
      %v2122 = vld [vmem:[%s914] sm:$0x1]
      %v2124 = vlaneseq
      %v2125 = vshrl.u32 %v2124, 7
      %v2126 = vsub.s32 0, %v2125
      %v2127 = vrot.slane %v2122, %v2126
      %v2133 = vunpack.c.l.b16 %v2118
      %v2134 = vunpack.c.l.b16 %v2119
      %v2135 = vunpack.c.l.b16 %v2120
      %v2136 = vunpack.c.l.b16 %v2121
      %v2137 = vpack.c.b16 %v2134, %v2133
      %v2138 = vpack.c.b16 %v2136, %v2135
      %v2142 = vsel %vm1168, %v2117, 0
      %2144 = vmatprep.subr.bf16.mxu0 0
      %2145 = vmatpush1.bf16.msra.mxu0 0
      %2146 = vmatprep.subr.bf16.mxu0 0
      %2147 = vmatpush1.bf16.msra.mxu0 0
      %2148 = vmatprep.subr.bf16.mxu0 0
      %2149 = vmatpush1.bf16.msra.mxu0 0
      %2150 = vmatprep.subr.bf16.mxu0 0
      %2151 = vmatpush1.bf16.msra.mxu0 0
      %2152 = vmatprep.subr.bf16.mxu0 0
      %2153 = vmatpush1.bf16.msra.mxu0 0
      %2154 = vmatprep.subr.bf16.mxu0 0
      %2155 = vmatpush1.bf16.msra.mxu0 0
      %2156 = vmatprep.subr.bf16.mxu0 0
      %2157 = vmatpush1.bf16.msra.mxu0 %v2138
      %2158 = vmatprep.subr.bf16.mxu0 0
      %2159 = vmatpush1.bf16.msra.mxu0 %v2137
      %2160 = vmatprep.subr.bf16.mxu0 0
      %2161 = vmatpush2.bf16.msra.mxu0 0
      %2162 = vmatprep.subr.bf16.mxu0 0
      %2163 = vmatpush2.bf16.msra.mxu0 0
      %2164 = vmatprep.subr.bf16.mxu0 0
      %2165 = vmatpush2.bf16.msra.mxu0 0
      %2166 = vmatprep.subr.bf16.mxu0 0
      %2167 = vmatpush2.bf16.msra.mxu0 0
      %2168 = vmatprep.subr.bf16.mxu0 0
      %2169 = vmatpush2.bf16.msra.mxu0 0
      %2170 = vmatprep.subr.bf16.mxu0 0
      %2171 = vmatpush2.bf16.msra.mxu0 0
      %2172 = vmatprep.subr.bf16.mxu0 0
      %2173 = vmatpush2.bf16.msra.mxu0 0
      %2174 = vmatprep.subr.bf16.mxu0 0
      %2175 = vmatpush2.bf16.msra.mxu0 0
      %2176 = vmatprep.mubr.bf16.mxu0 0
      %2177 = vmatmul.mubr.bf16.gmra.mxu0 %v2142
      %v2178 = vpop.f32.mrf.mxu0
      %v2179 = vadd.f32 %v2127, %v2178
      %v2180 = vpop.f32.mrf.mxu0
      %v2181 = vpop.f32.mrf.mxu0
      %v2182 = vpop.f32.mrf.mxu0
      %2183 = vdwg.mxu0
      %v2184 = vmul.f32 %v2179, 1.702
      %v2185 = vxor.u32 %v2184, 2147483648
      %v2186 = vmul.f32 %v2185, 1.442695
      %v2187 = vpow.pop %v2186
      %v2188 = vadd.f32 %v2187, 1.0
      %v2189 = vrcp.pop %v2188
      %v2190 = vmul.f32 1.0, %v2189
      %v2191 = vmul.f32 %v2179, %v2190
      %v2192 = vpack.c.bf16 %v2191, %v2191
      %v2193 = vld [vmem:[%s919] sm:$0xf]
      %v2194 = vld [vmem:[%s919 + $0x4] sm:$0xf]
      %v2195 = vld [vmem:[%s919 + $0x8] sm:$0xf]
      %v2196 = vld [vmem:[%s919 + $0xc] sm:$0xf]
      %v2197 = vld [vmem:[%s919 + $0x10] sm:$0xf]
      %v2198 = vld [vmem:[%s919 + $0x14] sm:$0xf]
      %v2199 = vld [vmem:[%s919 + $0x18] sm:$0xf]
      %v2200 = vld [vmem:[%s919 + $0x1c] sm:$0xf]
      %v2201 = vld [vmem:[%s922] sm:$0x1]
      %v2203 = vlaneseq
      %v2204 = vshrl.u32 %v2203, 7
      %v2205 = vsub.s32 0, %v2204
      %v2206 = vrot.slane %v2201, %v2205
      %v2216 = vunpack.c.l.b16 %v2193
      %v2217 = vunpack.c.l.b16 %v2194
      %v2218 = vunpack.c.l.b16 %v2195
      %v2219 = vunpack.c.l.b16 %v2196
      %v2220 = vunpack.c.l.b16 %v2197
      %v2221 = vunpack.c.l.b16 %v2198
      %v2222 = vunpack.c.l.b16 %v2199
      %v2223 = vunpack.c.l.b16 %v2200
      %v2224 = vpack.c.b16 %v2217, %v2216
      %v2225 = vpack.c.b16 %v2219, %v2218
      %v2226 = vpack.c.b16 %v2221, %v2220
      %v2227 = vpack.c.b16 %v2223, %v2222
      %vm2232 = vcmask 523264
      %v2234 = vsel %vm2232, %v2192, 0
      %2236 = vmatprep.subr.bf16.mxu0 0
      %2237 = vmatpush1.bf16.msra.mxu0 0
      %2238 = vmatprep.subr.bf16.mxu0 0
      %2239 = vmatpush1.bf16.msra.mxu0 0
      %2240 = vmatprep.subr.bf16.mxu0 0
      %2241 = vmatpush1.bf16.msra.mxu0 0
      %2242 = vmatprep.subr.bf16.mxu0 0
      %2243 = vmatpush1.bf16.msra.mxu0 0
      %2244 = vmatprep.subr.bf16.mxu0 0
      %2245 = vmatpush1.bf16.msra.mxu0 %v2227
      %2246 = vmatprep.subr.bf16.mxu0 0
      %2247 = vmatpush1.bf16.msra.mxu0 %v2226
      %2248 = vmatprep.subr.bf16.mxu0 0
      %2249 = vmatpush1.bf16.msra.mxu0 %v2225
      %2250 = vmatprep.subr.bf16.mxu0 0
      %2251 = vmatpush1.bf16.msra.mxu0 %v2224
      %2252 = vmatprep.subr.bf16.mxu0 0
      %2253 = vmatpush2.bf16.msra.mxu0 0
      %2254 = vmatprep.subr.bf16.mxu0 0
      %2255 = vmatpush2.bf16.msra.mxu0 0
      %2256 = vmatprep.subr.bf16.mxu0 0
      %2257 = vmatpush2.bf16.msra.mxu0 0
      %2258 = vmatprep.subr.bf16.mxu0 0
      %2259 = vmatpush2.bf16.msra.mxu0 0
      %2260 = vmatprep.subr.bf16.mxu0 0
      %2261 = vmatpush2.bf16.msra.mxu0 0
      %2262 = vmatprep.subr.bf16.mxu0 0
      %2263 = vmatpush2.bf16.msra.mxu0 0
      %2264 = vmatprep.subr.bf16.mxu0 0
      %2265 = vmatpush2.bf16.msra.mxu0 0
      %2266 = vmatprep.subr.bf16.mxu0 0
      %2267 = vmatpush2.bf16.msra.mxu0 0
      %2268 = vmatprep.mubr.bf16.mxu0 0
      %2269 = vmatmul.mubr.bf16.gmra.mxu0 %v2234
      %v2270 = vpop.f32.mrf.mxu0
      %v2271 = vadd.f32 %v2206, %v2270
      %v2272 = vpop.f32.mrf.mxu0
      %v2273 = vpop.f32.mrf.mxu0
      %v2274 = vpop.f32.mrf.mxu0
      %2275 = vdwg.mxu0
      %v2276 = vadd.f32 %v2087, %v2271
      %2277 = vst.msk [vmem:[%s926] sm:$0x1f] %vm1113, %v2276
      %p2278 = scmp.lt.s32.totalorder %s36, 1
      %s2279 = scalar_select %p2278, %s36, 1
      %s2280 = smul.addr %s2279, 8
      %s2281 = scalar_lea.vmem %s21, %s2280
      // Predicated region
      $region109: #{_lambda_.1} parent=103 // pred_check
        %p2282 = pneg %p588
      $region110: #{_lambda_.1} parent=103 // pred_check_branch
        %2284 = sbr.rel (%p2282) target = $region112
      $region111: #{_lambda_.1} parent=103 // pred_region
        _
      $region112: #{_lambda_.1} parent=103 // pred_fallthru
        _
    $region104: #{_lambda_.1} parent=5 // pred_fallthru
      _
    %p2285 = scmp.le.s32.totalorder 2, %s27
    // Predicated region
    $region113: #{_lambda_.1} parent=5 // pred_check
      %p2286 = pneg %p2285
    $region114: #{_lambda_.1} parent=5 // pred_check_branch
      %2288 = sbr.rel (%p2286) target = $region116
    $region115: #{_lambda_.1} parent=5 // pred_region
      %s2289 = ssub.s32 %s27, 2
      // Predicated region
      $region117: #{_lambda_.1} parent=115 // pred_check
        %p2290 = pneg %p594
      $region118: #{_lambda_.1} parent=115 // pred_check_branch
        %2292 = sbr.rel (%p2290) target = $region120
      $region119: #{_lambda_.1} parent=115 // pred_region
        %p2293 = scmp.lt.s32.totalorder %s38, 1
        %s2294 = scalar_select %p2293, %s38, 1
        %s2295 = smul.addr %s2294, 8
        %s2296 = scalar_lea.vmem %s21, %s2295
      $region120: #{_lambda_.1} parent=115 // pred_fallthru
        _
    $region116: #{_lambda_.1} parent=5 // pred_fallthru
      _
  $region6: #{_lambda_.1} parent=0 // loop_footer
    %s31 = sadd.s32 1, %s27
  $region7: #{_lambda_.1} parent=0 // loop_footer_branch
    %26 = sbr.rel target = $region3
  $region8: #{_lambda_.1} parent=0 // loop_exit
    _

</llo_original>
